<compile_context>
chip_gen: v7x
topology: tpu7x:2x2x1
jax: 0.10.0
libtpu: 0.0.40
codegen_flags: <defaults>
</compile_context>

<pallas_src>
import functools

import jax
import jax.numpy as jnp
from jax import lax
from jax.experimental import pallas as pl
from jax.experimental.pallas import tpu as pltpu

EPS = 1e-5
NEG_SLOPE = 0.2
_VMEM_LIMIT_BYTES = 64 * 1024 * 1024


def _leaky(x):
    return jnp.where(x >= 0, x, NEG_SLOPE * x)


def _round_up(x, m):
    return (x + m - 1) // m * m


def _stage1_kernel(x_ref, w1_ref, b1_ref, w2_ref, sum_ref, sq_ref):
    """conv1 + bias + leaky -> conv2; emit per-tile BN partial sum / sum-of-squares."""
    x = x_ref[...]                                                        # (Cin, t)
    h1 = jnp.dot(w1_ref[...], x, preferred_element_type=jnp.float32)     # (ndf, t)
    h1 = _leaky(h1 + b1_ref[...])
    h2 = jnp.dot(w2_ref[...], h1.astype(w2_ref.dtype),
                 preferred_element_type=jnp.float32)                      # (c2, t)
    sum_ref[0] = jnp.sum(h2, axis=1, keepdims=True)                       # (c2, 1)
    sq_ref[0] = jnp.sum(h2 * h2, axis=1, keepdims=True)                   # (c2, 1)


def _stage2_kernel(x_ref, w1_ref, w2_ref, consts_ref, w3_ref, o_ref, *, ndf):
    """Recompute h2, apply folded BN (scale/shift) + leaky, final 1x1 conv on MXU."""
    x = x_ref[...]                                                        # (Cin, t)
    b1 = consts_ref[0:ndf, 0:1]                                           # (ndf, 1)
    scale = consts_ref[:, 1:2]                                            # (c2, 1)
    shift = consts_ref[:, 2:3]                                            # (c2, 1)
    h1 = jnp.dot(w1_ref[...], x, preferred_element_type=jnp.float32)
    h1 = _leaky(h1 + b1)
    h2 = jnp.dot(w2_ref[...], h1.astype(w2_ref.dtype),
                 preferred_element_type=jnp.float32)                      # (c2, t)
    y = _leaky(h2 * scale + shift)
    # single output channel -> thin (1, c2) x (c2, t) matmul (MXU, lane-dense out)
    o_ref[...] = jnp.dot(w3_ref[...], y, preferred_element_type=jnp.float32)


def pixel_discriminator(x_nchw, params, *, tile_pixels=8192,
                        compute_dtype=jnp.float32):
    """Forward pass of PixelDiscriminator (training-mode BatchNorm semantics).

    x_nchw: (N, Cin, H, W) float32
    params: (w1 (ndf,Cin), b1 (ndf,), w2 (2ndf,ndf), gamma (2ndf,), beta (2ndf,), w3 (1,2ndf))
    returns: (N, 1, H, W) float32
    """
    w1, b1, w2, gamma, beta, w3 = params
    N, Cin, H, W = x_nchw.shape
    ndf = w1.shape[0]
    c2 = w2.shape[0]
    HW = H * W
    NHW = N * HW

    # lane-dense pixel tiling (multiple of 128); batch folded into the pixel axis
    t = _round_up(min(int(tile_pixels), _round_up(NHW, 128)), 128)
    p_pad = _round_up(NHW, t)
    n_steps = p_pad // t
    pad = p_pad - NHW

    # (N, Cin, H, W) -> (Cin, N*HW): channels on sublanes, pixels on lanes
    xp = jnp.transpose(x_nchw.reshape(N, Cin, HW), (1, 0, 2)).reshape(Cin, NHW)
    if pad:
        xp = jnp.pad(xp, ((0, 0), (0, pad)))

    cd = jnp.dtype(compute_dtype)
    xp = xp.astype(cd)
    w1c = w1.astype(cd)
    w2c = w2.astype(cd)
    b1c = b1.reshape(ndf, 1).astype(jnp.float32)

    cparams = pltpu.CompilerParams(dimension_semantics=("parallel",),
                                   vmem_limit_bytes=_VMEM_LIMIT_BYTES)

    # ---- stage 1: conv1 + leaky + conv2, per-tile BN partial stats only ----
    sums, sqs = pl.pallas_call(
        _stage1_kernel,
        out_shape=(
            jax.ShapeDtypeStruct((n_steps, c2, 1), jnp.float32),
            jax.ShapeDtypeStruct((n_steps, c2, 1), jnp.float32),
        ),
        grid=(n_steps,),
        in_specs=[
            pl.BlockSpec((Cin, t), lambda i: (0, i)),
            pl.BlockSpec((ndf, Cin), lambda i: (0, 0)),
            pl.BlockSpec((ndf, 1), lambda i: (0, 0)),
            pl.BlockSpec((c2, ndf), lambda i: (0, 0)),
        ],
        out_specs=[
            pl.BlockSpec((1, c2, 1), lambda i: (i, 0, 0)),
            pl.BlockSpec((1, c2, 1), lambda i: (i, 0, 0)),
        ],
        compiler_params=cparams,
    )(xp, w1c, b1c, w2c)

    # ---- tiny XLA fold: reduce partials, analytic pad correction, fold BN ----
    s = jnp.sum(sums[:, :, 0], axis=0)        # (c2,)
    ss = jnp.sum(sqs[:, :, 0], axis=0)        # (c2,)
    if pad:
        # padded pixels are all-zero columns -> per-pixel contribution is exactly
        # w2 @ leaky(b1); subtract it instead of masking inside the hot loop.
        h1p = _leaky(b1.astype(jnp.float32)).astype(cd).reshape(ndf, 1)
        cpad = jnp.dot(w2c, h1p, preferred_element_type=jnp.float32,
                       precision=lax.Precision.HIGHEST).reshape(c2)
        s = s - pad * cpad
        ss = ss - pad * cpad * cpad

    m_total = jnp.float32(NHW)
    mean = s / m_total
    var = ss / m_total - mean * mean          # biased variance (training-mode BN)
    inv = lax.rsqrt(var + EPS)
    scale = gamma.astype(jnp.float32) * inv
    shift = beta.astype(jnp.float32) - mean * scale

    # pack per-channel constants (b1 padded to c2 rows, BN scale, BN shift)
    b1_col = jnp.zeros((c2,), jnp.float32).at[:ndf].set(b1.astype(jnp.float32))
    consts = jnp.stack([b1_col, scale, shift], axis=1)    # (c2, 3)
    w3r = w3.reshape(1, c2).astype(jnp.float32)

    # ---- stage 2: recompute h2, folded BN + leaky, final 1x1 conv ----
    out = pl.pallas_call(
        functools.partial(_stage2_kernel, ndf=ndf),
        out_shape=jax.ShapeDtypeStruct((1, p_pad), jnp.float32),
        grid=(n_steps,),
        in_specs=[
            pl.BlockSpec((Cin, t), lambda i: (0, i)),
            pl.BlockSpec((ndf, Cin), lambda i: (0, 0)),
            pl.BlockSpec((c2, ndf), lambda i: (0, 0)),
            pl.BlockSpec((c2, 3), lambda i: (0, 0)),
            pl.BlockSpec((1, c2), lambda i: (0, 0)),
        ],
        out_specs=pl.BlockSpec((1, t), lambda i: (0, i)),
        compiler_params=cparams,
    )(xp, w1c, w2c, consts, w3r)

    return out[:, :NHW].reshape(N, 1, H, W)


def _reference(x_nchw, params):
    """Pure-JAX reference matching PyTorch training-mode forward."""
    w1, b1, w2, gamma, beta, w3 = params
    N, Cin, H, W = x_nchw.shape
    hp = lax.Precision.HIGHEST
    x = jnp.transpose(x_nchw, (0, 2, 3, 1)).reshape(-1, Cin)
    h = jnp.dot(x, w1.T, precision=hp) + b1
    h = jnp.where(h >= 0, h, NEG_SLOPE * h)
    h = jnp.dot(h, w2.T, precision=hp)
    mean = jnp.mean(h, axis=0, keepdims=True)
    var = jnp.mean(h * h, axis=0, keepdims=True) - mean * mean  # biased
    h = (h - mean) * lax.rsqrt(var + EPS) * gamma + beta
    h = jnp.where(h >= 0, h, NEG_SLOPE * h)
    o = jnp.dot(h, w3.T, precision=hp)
    return jnp.transpose(o.reshape(N, H, W, 1), (0, 3, 1, 2))


def init_params(key, input_nc, ndf):
    """Deterministic synthetic parameters in PyTorch Conv2d (out, in) layout."""
    k1, k2, k3, k4, k5, k6 = jax.random.split(key, 6)
    w1 = jax.random.normal(k1, (ndf, input_nc), jnp.float32) * 0.2
    b1 = jax.random.normal(k2, (ndf,), jnp.float32) * 0.1
    w2 = jax.random.normal(k3, (2 * ndf, ndf), jnp.float32) * 0.1
    gamma = 1.0 + 0.1 * jax.random.normal(k4, (2 * ndf,), jnp.float32)
    beta = 0.1 * jax.random.normal(k5, (2 * ndf,), jnp.float32)
    w3 = jax.random.normal(k6, (1, 2 * ndf), jnp.float32) * 0.1
    return (w1, b1, w2, gamma, beta, w3)


if __name__ == "__main__":
    key = jax.random.PRNGKey(0)
    k_x, k_p, k_x2 = jax.random.split(key, 3)

    N, Cin, H, W = 2, 4, 16, 16
    ndf = 32

    x = jax.random.normal(k_x, (N, Cin, H, W), jnp.float32)
    params = init_params(k_p, Cin, ndf)

    # main path (f32 matmul inputs)
    fwd = jax.jit(pixel_discriminator)
    out = jax.block_until_ready(fwd(x, params))
    ref = _reference(x, params)
    assert out.shape == (N, 1, H, W), out.shape
    assert jnp.allclose(out, ref, atol=1e-4, rtol=1e-4), float(
        jnp.max(jnp.abs(out - ref)))

    # multi-tile + ragged spatial size (exercises the analytic pad correction)
    N2, H2, W2 = 3, 10, 10
    x2 = jax.random.normal(k_x2, (N2, Cin, H2, W2), jnp.float32)
    out2 = jax.block_until_ready(
        jax.jit(functools.partial(pixel_discriminator, tile_pixels=128))(x2, params))
    ref2 = _reference(x2, params)
    assert out2.shape == (N2, 1, H2, W2), out2.shape
    assert jnp.allclose(out2, ref2, atol=1e-4, rtol=1e-4), float(
        jnp.max(jnp.abs(out2 - ref2)))

    # optional bf16 matmul-input path (GAN-discriminator-level accuracy)
    out_bf = jax.block_until_ready(
        jax.jit(functools.partial(pixel_discriminator,
                                  compute_dtype=jnp.bfloat16))(x, params))
    assert float(jnp.max(jnp.abs(out_bf - ref))) < 0.25

    print("KERNEL_OK")
</pallas_src>

<mosaic_0001>
module attributes {stable_mosaic.version = 11 : i64} {
  func.func @_stage1_kernel(%arg0: i32, %arg1: memref<4x512xf32, #tpu.memory_space<vmem>>, %arg2: memref<32x4xf32, #tpu.memory_space<vmem>>, %arg3: memref<32x1xf32, #tpu.memory_space<vmem>>, %arg4: memref<64x32xf32, #tpu.memory_space<vmem>>, %arg5: memref<1x64x1xf32, #tpu.memory_space<vmem>>, %arg6: memref<1x64x1xf32, #tpu.memory_space<vmem>>) attributes {dimension_semantics = [#tpu.dimension_semantics<parallel>], iteration_bounds = array<i64: 1>, scalar_prefetch = 0 : i64, scratch_operands = 0 : i64, tpu.core_type = #tpu.core_type<tc>, window_params = [{transform_indices = @transform_0, window_bounds = array<i64: 4, 512>}, {pipeline_mode = #tpu.pipeline_mode<synchronous>, transform_indices = @transform_1, window_bounds = array<i64: 32, 4>}, {pipeline_mode = #tpu.pipeline_mode<synchronous>, transform_indices = @transform_2, window_bounds = array<i64: 32, 1>}, {pipeline_mode = #tpu.pipeline_mode<synchronous>, transform_indices = @transform_3, window_bounds = array<i64: 64, 32>}, {transform_indices = @transform_4, window_bounds = array<i64: 1, 64, 1>}, {transform_indices = @transform_5, window_bounds = array<i64: 1, 64, 1>}]} {
    %c0 = arith.constant 0 : index
    %c0_0 = arith.constant 0 : index
    %0 = vector.load %arg1[%c0, %c0_0] : memref<4x512xf32, #tpu.memory_space<vmem>>, vector<4x512xf32>
    %c0_1 = arith.constant 0 : index
    %c0_2 = arith.constant 0 : index
    %1 = vector.load %arg2[%c0_1, %c0_2] : memref<32x4xf32, #tpu.memory_space<vmem>>, vector<32x4xf32>
    %cst = arith.constant dense<0.000000e+00> : vector<32x512xf32>
    %2 = tpu.matmul %1, %0, %cst {dimension_numbers = #tpu.dot_dimension_numbers<[1], [0], [0], [1], [0, 0, 1, 1], [], []>} : vector<32x4xf32>, vector<4x512xf32>, vector<32x512xf32> -> vector<32x512xf32>
    %c0_3 = arith.constant 0 : index
    %c0_4 = arith.constant 0 : index
    %3 = vector.load %arg3[%c0_3, %c0_4] : memref<32x1xf32, #tpu.memory_space<vmem>>, vector<32x1xf32>
    %4 = vector.broadcast %3 : vector<32x1xf32> to vector<32x512xf32>
    %5 = arith.addf %2, %4 : vector<32x512xf32>
    %cst_5 = arith.constant 0.000000e+00 : f32
    %6 = vector.broadcast %cst_5 : f32 to vector<32x512xf32>
    %7 = arith.cmpf oge, %5, %6 : vector<32x512xf32>
    %cst_6 = arith.constant 2.000000e-01 : f32
    %8 = vector.broadcast %cst_6 : f32 to vector<32x512xf32>
    %9 = arith.mulf %8, %5 : vector<32x512xf32>
    %10 = arith.select %7, %5, %9 : vector<32x512xi1>, vector<32x512xf32>
    %c0_7 = arith.constant 0 : index
    %c0_8 = arith.constant 0 : index
    %11 = vector.load %arg4[%c0_7, %c0_8] : memref<64x32xf32, #tpu.memory_space<vmem>>, vector<64x32xf32>
    %cst_9 = arith.constant dense<0.000000e+00> : vector<64x512xf32>
    %12 = tpu.matmul %11, %10, %cst_9 {dimension_numbers = #tpu.dot_dimension_numbers<[1], [0], [0], [1], [0, 0, 1, 1], [], []>} : vector<64x32xf32>, vector<32x512xf32>, vector<64x512xf32> -> vector<64x512xf32>
    %cst_10 = arith.constant dense<0.000000e+00> : vector<64xf32>
    %13 = vector.multi_reduction <add>, %12, %cst_10 [1] : vector<64x512xf32> to vector<64xf32>
    %14 = vector.shape_cast %13 : vector<64xf32> to vector<64x1xf32>
    %c0_11 = arith.constant 0 : index
    %c0_12 = arith.constant 0 : index
    %c0_13 = arith.constant 0 : index
    %15 = vector.load %arg5[%c0_11, %c0_12, %c0_13] : memref<1x64x1xf32, #tpu.memory_space<vmem>>, vector<1x64x1xf32>
    %16 = vector.shape_cast %15 : vector<1x64x1xf32> to vector<64x1xf32>
    %17 = vector.shape_cast %14 : vector<64x1xf32> to vector<1x64x1xf32>
    tpu.vector_store %arg5[%c0_11, %c0_12, %c0_13], %17 {strides = array<i32>} : memref<1x64x1xf32, #tpu.memory_space<vmem>>, vector<1x64x1xf32>,
    %18 = arith.mulf %12, %12 : vector<64x512xf32>
    %cst_14 = arith.constant dense<0.000000e+00> : vector<64xf32>
    %19 = vector.multi_reduction <add>, %18, %cst_14 [1] : vector<64x512xf32> to vector<64xf32>
    %20 = vector.shape_cast %19 : vector<64xf32> to vector<64x1xf32>
    %c0_15 = arith.constant 0 : index
    %c0_16 = arith.constant 0 : index
    %c0_17 = arith.constant 0 : index
    %21 = vector.load %arg6[%c0_15, %c0_16, %c0_17] : memref<1x64x1xf32, #tpu.memory_space<vmem>>, vector<1x64x1xf32>
    %22 = vector.shape_cast %21 : vector<1x64x1xf32> to vector<64x1xf32>
    %23 = vector.shape_cast %20 : vector<64x1xf32> to vector<1x64x1xf32>
    tpu.vector_store %arg6[%c0_15, %c0_16, %c0_17], %23 {strides = array<i32>} : memref<1x64x1xf32, #tpu.memory_space<vmem>>, vector<1x64x1xf32>,
    return
  }
  func.func @transform_0(%arg0: i32) -> (i32, i32) {
    %c0_i32 = arith.constant 0 : i32
    %c0_i32_0 = arith.constant 0 : i32
    return %c0_i32, %arg0 : i32, i32
  }
  func.func @transform_1(%arg0: i32) -> (i32, i32) {
    %c0_i32 = arith.constant 0 : i32
    %c0_i32_0 = arith.constant 0 : i32
    %c0_i32_1 = arith.constant 0 : i32
    return %c0_i32, %c0_i32_0 : i32, i32
  }
  func.func @transform_2(%arg0: i32) -> (i32, i32) {
    %c0_i32 = arith.constant 0 : i32
    %c0_i32_0 = arith.constant 0 : i32
    %c0_i32_1 = arith.constant 0 : i32
    return %c0_i32, %c0_i32_0 : i32, i32
  }
  func.func @transform_3(%arg0: i32) -> (i32, i32) {
    %c0_i32 = arith.constant 0 : i32
    %c0_i32_0 = arith.constant 0 : i32
    %c0_i32_1 = arith.constant 0 : i32
    return %c0_i32, %c0_i32_0 : i32, i32
  }
  func.func @transform_4(%arg0: i32) -> (i32, i32, i32) {
    %c0_i32 = arith.constant 0 : i32
    %c0_i32_0 = arith.constant 0 : i32
    %c0_i32_1 = arith.constant 0 : i32
    return %arg0, %c0_i32, %c0_i32_0 : i32, i32, i32
  }
  func.func @transform_5(%arg0: i32) -> (i32, i32, i32) {
    %c0_i32 = arith.constant 0 : i32
    %c0_i32_0 = arith.constant 0 : i32
    %c0_i32_1 = arith.constant 0 : i32
    return %arg0, %c0_i32, %c0_i32_0 : i32, i32, i32
  }
}

module attributes {stable_mosaic.version = 11 : i64} {
  func.func @_stage2_kernel(%arg0: i32, %arg1: memref<4x512xf32, #tpu.memory_space<vmem>>, %arg2: memref<32x4xf32, #tpu.memory_space<vmem>>, %arg3: memref<64x32xf32, #tpu.memory_space<vmem>>, %arg4: memref<64x3xf32, #tpu.memory_space<vmem>>, %arg5: memref<1x64xf32, #tpu.memory_space<vmem>>, %arg6: memref<1x512xf32, #tpu.memory_space<vmem>>) attributes {dimension_semantics = [#tpu.dimension_semantics<parallel>], iteration_bounds = array<i64: 1>, scalar_prefetch = 0 : i64, scratch_operands = 0 : i64, tpu.core_type = #tpu.core_type<tc>, window_params = [{transform_indices = @transform_0, window_bounds = array<i64: 4, 512>}, {pipeline_mode = #tpu.pipeline_mode<synchronous>, transform_indices = @transform_1, window_bounds = array<i64: 32, 4>}, {pipeline_mode = #tpu.pipeline_mode<synchronous>, transform_indices = @transform_2, window_bounds = array<i64: 64, 32>}, {pipeline_mode = #tpu.pipeline_mode<synchronous>, transform_indices = @transform_3, window_bounds = array<i64: 64, 3>}, {pipeline_mode = #tpu.pipeline_mode<synchronous>, transform_indices = @transform_4, window_bounds = array<i64: 1, 64>}, {transform_indices = @transform_5, window_bounds = array<i64: 1, 512>}]} {
    %c0 = arith.constant 0 : index
    %c0_0 = arith.constant 0 : index
    %0 = vector.load %arg1[%c0, %c0_0] : memref<4x512xf32, #tpu.memory_space<vmem>>, vector<4x512xf32>
    %c0_1 = arith.constant 0 : index
    %c0_2 = arith.constant 0 : index
    %1 = vector.load %arg4[%c0_1, %c0_2] : memref<64x3xf32, #tpu.memory_space<vmem>>, vector<32x1xf32>
    %c0_3 = arith.constant 0 : index
    %c1 = arith.constant 1 : index
    %2 = vector.load %arg4[%c0_3, %c1] : memref<64x3xf32, #tpu.memory_space<vmem>>, vector<64x1xf32>
    %c0_4 = arith.constant 0 : index
    %c2 = arith.constant 2 : index
    %3 = vector.load %arg4[%c0_4, %c2] : memref<64x3xf32, #tpu.memory_space<vmem>>, vector<64x1xf32>
    %c0_5 = arith.constant 0 : index
    %c0_6 = arith.constant 0 : index
    %4 = vector.load %arg2[%c0_5, %c0_6] : memref<32x4xf32, #tpu.memory_space<vmem>>, vector<32x4xf32>
    %cst = arith.constant dense<0.000000e+00> : vector<32x512xf32>
    %5 = tpu.matmul %4, %0, %cst {dimension_numbers = #tpu.dot_dimension_numbers<[1], [0], [0], [1], [0, 0, 1, 1], [], []>} : vector<32x4xf32>, vector<4x512xf32>, vector<32x512xf32> -> vector<32x512xf32>
    %6 = vector.broadcast %1 : vector<32x1xf32> to vector<32x512xf32>
    %7 = arith.addf %5, %6 : vector<32x512xf32>
    %cst_7 = arith.constant 0.000000e+00 : f32
    %8 = vector.broadcast %cst_7 : f32 to vector<32x512xf32>
    %9 = arith.cmpf oge, %7, %8 : vector<32x512xf32>
    %cst_8 = arith.constant 2.000000e-01 : f32
    %10 = vector.broadcast %cst_8 : f32 to vector<32x512xf32>
    %11 = arith.mulf %10, %7 : vector<32x512xf32>
    %12 = arith.select %9, %7, %11 : vector<32x512xi1>, vector<32x512xf32>
    %c0_9 = arith.constant 0 : index
    %c0_10 = arith.constant 0 : index
    %13 = vector.load %arg3[%c0_9, %c0_10] : memref<64x32xf32, #tpu.memory_space<vmem>>, vector<64x32xf32>
    %cst_11 = arith.constant dense<0.000000e+00> : vector<64x512xf32>
    %14 = tpu.matmul %13, %12, %cst_11 {dimension_numbers = #tpu.dot_dimension_numbers<[1], [0], [0], [1], [0, 0, 1, 1], [], []>} : vector<64x32xf32>, vector<32x512xf32>, vector<64x512xf32> -> vector<64x512xf32>
    %15 = vector.broadcast %2 : vector<64x1xf32> to vector<64x512xf32>
    %16 = arith.mulf %14, %15 : vector<64x512xf32>
    %17 = vector.broadcast %3 : vector<64x1xf32> to vector<64x512xf32>
    %18 = arith.addf %16, %17 : vector<64x512xf32>
    %cst_12 = arith.constant 0.000000e+00 : f32
    %19 = vector.broadcast %cst_12 : f32 to vector<64x512xf32>
    %20 = arith.cmpf oge, %18, %19 : vector<64x512xf32>
    %cst_13 = arith.constant 2.000000e-01 : f32
    %21 = vector.broadcast %cst_13 : f32 to vector<64x512xf32>
    %22 = arith.mulf %21, %18 : vector<64x512xf32>
    %23 = arith.select %20, %18, %22 : vector<64x512xi1>, vector<64x512xf32>
    %c0_14 = arith.constant 0 : index
    %c0_15 = arith.constant 0 : index
    %24 = vector.load %arg5[%c0_14, %c0_15] : memref<1x64xf32, #tpu.memory_space<vmem>>, vector<1x64xf32>
    %cst_16 = arith.constant dense<0.000000e+00> : vector<1x512xf32>
    %25 = tpu.matmul %24, %23, %cst_16 {dimension_numbers = #tpu.dot_dimension_numbers<[1], [0], [0], [1], [0, 0, 1, 1], [], []>} : vector<1x64xf32>, vector<64x512xf32>, vector<1x512xf32> -> vector<1x512xf32>
    %c0_17 = arith.constant 0 : index
    %c0_18 = arith.constant 0 : index
    %26 = vector.load %arg6[%c0_17, %c0_18] : memref<1x512xf32, #tpu.memory_space<vmem>>, vector<1x512xf32>
    tpu.vector_store %arg6[%c0_17, %c0_18], %25 {strides = array<i32>} : memref<1x512xf32, #tpu.memory_space<vmem>>, vector<1x512xf32>,
    return
  }
  func.func @transform_0(%arg0: i32) -> (i32, i32) {
    %c0_i32 = arith.constant 0 : i32
    %c0_i32_0 = arith.constant 0 : i32
    return %c0_i32, %arg0 : i32, i32
  }
  func.func @transform_1(%arg0: i32) -> (i32, i32) {
    %c0_i32 = arith.constant 0 : i32
    %c0_i32_0 = arith.constant 0 : i32
    %c0_i32_1 = arith.constant 0 : i32
    return %c0_i32, %c0_i32_0 : i32, i32
  }
  func.func @transform_2(%arg0: i32) -> (i32, i32) {
    %c0_i32 = arith.constant 0 : i32
    %c0_i32_0 = arith.constant 0 : i32
    %c0_i32_1 = arith.constant 0 : i32
    return %c0_i32, %c0_i32_0 : i32, i32
  }
  func.func @transform_3(%arg0: i32) -> (i32, i32) {
    %c0_i32 = arith.constant 0 : i32
    %c0_i32_0 = arith.constant 0 : i32
    %c0_i32_1 = arith.constant 0 : i32
    return %c0_i32, %c0_i32_0 : i32, i32
  }
  func.func @transform_4(%arg0: i32) -> (i32, i32) {
    %c0_i32 = arith.constant 0 : i32
    %c0_i32_0 = arith.constant 0 : i32
    %c0_i32_1 = arith.constant 0 : i32
    return %c0_i32, %c0_i32_0 : i32, i32
  }
  func.func @transform_5(%arg0: i32) -> (i32, i32) {
    %c0_i32 = arith.constant 0 : i32
    %c0_i32_0 = arith.constant 0 : i32
    return %c0_i32, %arg0 : i32, i32
  }
}

</mosaic_0001>

<llo_original>
// kernel: pixel_discriminator.2
$region0: #{pixel_discriminator.2}
  #allocation0 [shape = 'u32[]', space=smem, size = 0x4, offset = 0x4, fixed_abs, tag = 'smem constant byte address 0x4 - core index']
  #allocation1 [shape = 'u32[144,128]{1,0:T(1,128)}', space=vmem, size = 0x12000, scoped, tag = 'internal scratch']
  %s0 = inlined_call_operand.hbm [shape: f32[4,512], index: 0, kind: input, shape index: {}]
  %s1 = inlined_call_operand.hbm [shape: f32[32,4], index: 1, kind: input, shape index: {}]
  %s2 = inlined_call_operand.hbm [shape: f32[32,1], index: 2, kind: input, shape index: {}]
  %s3 = inlined_call_operand.hbm [shape: f32[64,32], index: 3, kind: input, shape index: {}]
  %s4 = inlined_call_operand.hbm [shape: f32[1,64,1], index: 4, kind: output, shape index: {0}]
  %s5 = inlined_call_operand.hbm [shape: f32[1,64,1], index: 5, kind: output, shape index: {1}]
  %6 = xla_tuple %s4, %s5
  %s7 = sld [smem:[#allocation0]]
  $region50: #{pixel_discriminator.2} parent=0
    _
  %s9 = ssub.s32 1, %s7
  %s10 = scalar_select 0, %s9, %s7
  $region1: #{pixel_discriminator.2} parent=0
    #allocation2 [shape = 'u8[8192]{0}', space=vmem, size = 0x2000, scoped, tag = 'input window, operand 0, single buffered']
    #allocation3 [shape = 's32[1]{0}', space=sflag, size = 0x4, scoped, tag = 'scoped memory for pixel_discriminator.2']
    #allocation4 [shape = 's32[1]{0}', space=sflag, size = 0x4, scoped, tag = 'scoped memory for pixel_discriminator.2']
    #allocation5 [shape = 'u8[16384]{0}', space=vmem, size = 0x4000, scoped, tag = 'input window, operand 1, single buffered']
    #allocation6 [shape = 's32[1]{0}', space=sflag, size = 0x4, scoped, tag = 'scoped memory for pixel_discriminator.2']
    #allocation7 [shape = 'u8[16384]{0}', space=vmem, size = 0x4000, scoped, tag = 'input window, operand 2, single buffered']
    #allocation8 [shape = 'u8[32768]{0}', space=vmem, size = 0x8000, scoped, tag = 'input window, operand 3, single buffered']
    #allocation9 [shape = 's32[1]{0}', space=sflag, size = 0x4, scoped, tag = 'scoped memory for pixel_discriminator.2']
    #allocation10 [shape = 'u8[32768]{0}', space=vmem, size = 0x8000, scoped, tag = 'output window, operand 0, single buffered']
    #allocation11 [shape = 'u8[32768]{0}', space=vmem, size = 0x8000, scoped, tag = 'output window, operand 1, single buffered']
    #allocation12 [shape = 's32[1]{0}', space=sflag, size = 0x4, scoped, tag = 'scoped memory for pixel_discriminator.2']
    %11 = vsyncpa [#allocation3], 0
    %12 = vsyncpa [#allocation6], 0
    %13 = vsyncpa [#allocation9], 0
    %14 = vsyncpa [#allocation4], 0
    %15 = vsyncpa [#allocation12], 0
    // Predicated region
    $region2: #{pixel_discriminator.2} parent=1 // pred_check
      _
    $region3: #{pixel_discriminator.2} parent=1 // pred_check_branch
      %17 = sbr.rel (0) target = $region5
    $region4: #{pixel_discriminator.2} parent=1 // pred_region
      %s19 = ssub.s32 256, 256
      %20 = vsyncadd [#allocation3], %s19
      %s22 = sshll.u32 [#allocation2], 4
      %s23 = int_to_ptr.vmem [resolvable:$true] %s22
      %25 = dma.hbm_to_vmem [thread:$0]  %s0, 256, %s23, [#allocation3]
    $region5: #{pixel_discriminator.2} parent=1 // pred_fallthru
      _
    // Predicated region
    $region6: #{pixel_discriminator.2} parent=1 // pred_check
      _
    $region7: #{pixel_discriminator.2} parent=1 // pred_check_branch
      %27 = sbr.rel (0) target = $region9
    $region8: #{pixel_discriminator.2} parent=1 // pred_region
      %s29 = ssub.s32 512, 512
      %30 = vsyncadd [#allocation6], %s29
      %s31 = sshll.u32 [#allocation5], 4
      %s32 = int_to_ptr.vmem [resolvable:$true] %s31
      %37 = dma.hbm_to_vmem [thread:$0]  %s1, 512, %s32, [#allocation6], 128, 128, 8
    $region9: #{pixel_discriminator.2} parent=1 // pred_fallthru
      _
    // Predicated region
    $region10: #{pixel_discriminator.2} parent=1 // pred_check
      _
    $region11: #{pixel_discriminator.2} parent=1 // pred_check_branch
      %39 = sbr.rel (0) target = $region13
    $region12: #{pixel_discriminator.2} parent=1 // pred_region
      %s41 = ssub.s32 512, 512
      %42 = vsyncadd [#allocation6], %s41
      %s43 = sshll.u32 [#allocation7], 4
      %s44 = int_to_ptr.vmem [resolvable:$true] %s43
      %49 = dma.hbm_to_vmem [thread:$0]  %s2, 512, %s44, [#allocation6], 128, 128, 8
    $region13: #{pixel_discriminator.2} parent=1 // pred_fallthru
      _
    // Predicated region
    $region14: #{pixel_discriminator.2} parent=1 // pred_check
      _
    $region15: #{pixel_discriminator.2} parent=1 // pred_check_branch
      %51 = sbr.rel (0) target = $region17
    $region16: #{pixel_discriminator.2} parent=1 // pred_region
      %s53 = ssub.s32 1024, 1024
      %54 = vsyncadd [#allocation9], %s53
      %s55 = sshll.u32 [#allocation8], 4
      %s56 = int_to_ptr.vmem [resolvable:$true] %s55
      %61 = dma.hbm_to_vmem [thread:$0]  %s3, 1024, %s56, [#allocation9], 128, 128, 8
    $region17: #{pixel_discriminator.2} parent=1 // pred_fallthru
      _
    // Predicated region
    $region18: #{pixel_discriminator.2} parent=1 // pred_check
      _
    $region19: #{pixel_discriminator.2} parent=1 // pred_check_branch
      %63 = sbr.rel (0) target = $region21
    $region20: #{pixel_discriminator.2} parent=1 // pred_region
      %64 = dma.done [#allocation3], 256
    $region21: #{pixel_discriminator.2} parent=1 // pred_fallthru
      _
    // Predicated region
    $region22: #{pixel_discriminator.2} parent=1 // pred_check
      _
    $region23: #{pixel_discriminator.2} parent=1 // pred_check_branch
      %66 = sbr.rel (0) target = $region25
    $region24: #{pixel_discriminator.2} parent=1 // pred_region
      %67 = dma.done [#allocation6], 512
    $region25: #{pixel_discriminator.2} parent=1 // pred_fallthru
      _
    // Predicated region
    $region26: #{pixel_discriminator.2} parent=1 // pred_check
      _
    $region27: #{pixel_discriminator.2} parent=1 // pred_check_branch
      %69 = sbr.rel (0) target = $region29
    $region28: #{pixel_discriminator.2} parent=1 // pred_region
      %70 = dma.done [#allocation6], 512
    $region29: #{pixel_discriminator.2} parent=1 // pred_fallthru
      _
    // Predicated region
    $region30: #{pixel_discriminator.2} parent=1 // pred_check
      _
    $region31: #{pixel_discriminator.2} parent=1 // pred_check_branch
      %72 = sbr.rel (0) target = $region33
    $region32: #{pixel_discriminator.2} parent=1 // pred_region
      %73 = dma.done [#allocation9], 1024
    $region33: #{pixel_discriminator.2} parent=1 // pred_fallthru
      _
    %v74 = vld [vmem:[#allocation2] sm:$0xff]
    %v75 = vld [vmem:[#allocation2 + $0x8] sm:$0xff]
    %v76 = vld [vmem:[#allocation5] sm:$0xff]
    %v77 = vld [vmem:[#allocation5 + $0x8] sm:$0xff]
    %v78 = vld [vmem:[#allocation5 + $0x10] sm:$0xff]
    %v79 = vld [vmem:[#allocation5 + $0x18] sm:$0xff]
    %v80 = vld [vmem:[#allocation7] sm:$0xff]
    %v81 = vld [vmem:[#allocation7 + $0x8] sm:$0xff]
    %v82 = vld [vmem:[#allocation7 + $0x10] sm:$0xff]
    %v83 = vld [vmem:[#allocation7 + $0x18] sm:$0xff]
    %85 = vset.pattern.permute.xlu0 0
    %86 = vperm.xlu0 %85, %v80
    %v87 = vpop.permute.xlu0 %86
    %90 = vset.pattern.permute.xlu0 0
    %91 = vperm.xlu0 %90, %v81
    %v92 = vpop.permute.xlu0 %91
    %95 = vset.pattern.permute.xlu0 0
    %96 = vperm.xlu0 %95, %v82
    %v97 = vpop.permute.xlu0 %96
    %100 = vset.pattern.permute.xlu0 0
    %101 = vperm.xlu0 %100, %v83
    %v102 = vpop.permute.xlu0 %101
    %v106 = vcombine.high %v74, %v74
    %v107 = vcombine.high %v75, %v75
    %vm108 = vcmask 31744
    %v110 = vsel %vm108, %v76, 0
    %v113 = vsel %vm108, %v77, 0
    %v116 = vsel %vm108, %v78, 0
    %v119 = vsel %vm108, %v79, 0
    %vm121 = vcmask 1043456
    %v122 = vsel %vm121, %v74, 0
    %v124 = vsel %vm121, %v106, 0
    %v126 = vsel %vm121, %v75, 0
    %v128 = vsel %vm121, %v107, 0
    %130 = vmatprep.subr.mxu0 %v124
    %131 = vmatpush1.msra.mxu0 %v122
    %132 = vmatprep.subr.mxu0 0.0
    %133 = vmatpush1.msra.mxu0 0.0
    %134 = vmatprep.subr.mxu0 0.0
    %135 = vmatpush1.msra.mxu0 0.0
    %136 = vmatprep.subr.mxu0 0.0
    %137 = vmatpush1.msra.mxu0 0.0
    %138 = vmatprep.subr.mxu0 0.0
    %139 = vmatpush1.msra.mxu0 0.0
    %140 = vmatprep.subr.mxu0 0.0
    %141 = vmatpush1.msra.mxu0 0.0
    %142 = vmatprep.subr.mxu0 0.0
    %143 = vmatpush1.msra.mxu0 0.0
    %144 = vmatprep.subr.mxu0 0.0
    %145 = vmatpush1.msra.mxu0 0.0
    %146 = vmatprep.subr.mxu0 0.0
    %147 = vmatpush1.msra.mxu0 0.0
    %148 = vmatprep.subr.mxu0 0.0
    %149 = vmatpush1.msra.mxu0 0.0
    %150 = vmatprep.subr.mxu0 0.0
    %151 = vmatpush1.msra.mxu0 0.0
    %152 = vmatprep.subr.mxu0 0.0
    %153 = vmatpush1.msra.mxu0 0.0
    %154 = vmatprep.subr.mxu0 0.0
    %155 = vmatpush1.msra.mxu0 0.0
    %156 = vmatprep.subr.mxu0 0.0
    %157 = vmatpush1.msra.mxu0 0.0
    %158 = vmatprep.subr.mxu0 0.0
    %159 = vmatpush1.msra.mxu0 0.0
    %160 = vmatprep.subr.mxu0 0.0
    %161 = vmatpush1.msra.mxu0 0.0
    %162 = vmatprep.subr.mxu0 0.0
    %163 = vmatpush1.msra.mxu0 0.0
    %164 = vmatprep.subr.mxu0 0.0
    %165 = vmatpush1.msra.mxu0 0.0
    %166 = vmatprep.subr.mxu0 0.0
    %167 = vmatpush1.msra.mxu0 0.0
    %168 = vmatprep.subr.mxu0 0.0
    %169 = vmatpush1.msra.mxu0 0.0
    %170 = vmatprep.subr.mxu0 0.0
    %171 = vmatpush1.msra.mxu0 0.0
    %172 = vmatprep.subr.mxu0 0.0
    %173 = vmatpush1.msra.mxu0 0.0
    %174 = vmatprep.subr.mxu0 0.0
    %175 = vmatpush1.msra.mxu0 0.0
    %176 = vmatprep.subr.mxu0 0.0
    %177 = vmatpush1.msra.mxu0 0.0
    %178 = vmatprep.subr.mxu0 0.0
    %179 = vmatpush1.msra.mxu0 0.0
    %180 = vmatprep.subr.mxu0 0.0
    %181 = vmatpush1.msra.mxu0 0.0
    %182 = vmatprep.subr.mxu0 0.0
    %183 = vmatpush1.msra.mxu0 0.0
    %184 = vmatprep.subr.mxu0 0.0
    %185 = vmatpush1.msra.mxu0 0.0
    %186 = vmatprep.subr.mxu0 0.0
    %187 = vmatpush1.msra.mxu0 0.0
    %188 = vmatprep.subr.mxu0 0.0
    %189 = vmatpush1.msra.mxu0 0.0
    %190 = vmatprep.subr.mxu0 0.0
    %191 = vmatpush1.msra.mxu0 0.0
    %192 = vmatprep.subr.mxu0 0.0
    %193 = vmatpush1.msra.mxu0 0.0
    %194 = vmatprep.mubr.f32.mxu0 0.0
    %195 = vmatmul.mubr.f32.gmra.mrb[0].mxu0 %v110
    %v196 = vpop.f32.mrb[0].mxu0
    %v197 = vadd.f32 %v87, %v196
    %v198 = vpop.f32.mrb[0].mxu0
    %v199 = vadd.f32 %v87, %v198
    %200 = vmatprep.mubr.f32.mxu0 0.0
    %201 = vmatmul.mubr.f32.gmra.mrb[0].mxu0 %v113
    %v202 = vpop.f32.mrb[0].mxu0
    %v203 = vadd.f32 %v92, %v202
    %v204 = vpop.f32.mrb[0].mxu0
    %v205 = vadd.f32 %v92, %v204
    %206 = vmatprep.mubr.f32.mxu0 0.0
    %207 = vmatmul.mubr.f32.gmra.mrb[0].mxu0 %v116
    %v208 = vpop.f32.mrb[0].mxu0
    %v209 = vadd.f32 %v97, %v208
    %v210 = vpop.f32.mrb[0].mxu0
    %v211 = vadd.f32 %v97, %v210
    %212 = vmatprep.mubr.f32.mxu0 0.0
    %213 = vmatmul.mubr.f32.gmra.mrb[0].mxu0 %v119
    %v214 = vpop.f32.mrb[0].mxu0
    %v215 = vadd.f32 %v102, %v214
    %v216 = vpop.f32.mrb[0].mxu0
    %v217 = vadd.f32 %v102, %v216
    %218 = vdwg.mxu0
    %219 = vmatprep.subr.mxu0 %v128
    %220 = vmatpush1.msra.mxu0 %v126
    %221 = vmatprep.subr.mxu0 0.0
    %222 = vmatpush1.msra.mxu0 0.0
    %223 = vmatprep.subr.mxu0 0.0
    %224 = vmatpush1.msra.mxu0 0.0
    %225 = vmatprep.subr.mxu0 0.0
    %226 = vmatpush1.msra.mxu0 0.0
    %227 = vmatprep.subr.mxu0 0.0
    %228 = vmatpush1.msra.mxu0 0.0
    %229 = vmatprep.subr.mxu0 0.0
    %230 = vmatpush1.msra.mxu0 0.0
    %231 = vmatprep.subr.mxu0 0.0
    %232 = vmatpush1.msra.mxu0 0.0
    %233 = vmatprep.subr.mxu0 0.0
    %234 = vmatpush1.msra.mxu0 0.0
    %235 = vmatprep.subr.mxu0 0.0
    %236 = vmatpush1.msra.mxu0 0.0
    %237 = vmatprep.subr.mxu0 0.0
    %238 = vmatpush1.msra.mxu0 0.0
    %239 = vmatprep.subr.mxu0 0.0
    %240 = vmatpush1.msra.mxu0 0.0
    %241 = vmatprep.subr.mxu0 0.0
    %242 = vmatpush1.msra.mxu0 0.0
    %243 = vmatprep.subr.mxu0 0.0
    %244 = vmatpush1.msra.mxu0 0.0
    %245 = vmatprep.subr.mxu0 0.0
    %246 = vmatpush1.msra.mxu0 0.0
    %247 = vmatprep.subr.mxu0 0.0
    %248 = vmatpush1.msra.mxu0 0.0
    %249 = vmatprep.subr.mxu0 0.0
    %250 = vmatpush1.msra.mxu0 0.0
    %251 = vmatprep.subr.mxu0 0.0
    %252 = vmatpush1.msra.mxu0 0.0
    %253 = vmatprep.subr.mxu0 0.0
    %254 = vmatpush1.msra.mxu0 0.0
    %255 = vmatprep.subr.mxu0 0.0
    %256 = vmatpush1.msra.mxu0 0.0
    %257 = vmatprep.subr.mxu0 0.0
    %258 = vmatpush1.msra.mxu0 0.0
    %259 = vmatprep.subr.mxu0 0.0
    %260 = vmatpush1.msra.mxu0 0.0
    %261 = vmatprep.subr.mxu0 0.0
    %262 = vmatpush1.msra.mxu0 0.0
    %263 = vmatprep.subr.mxu0 0.0
    %264 = vmatpush1.msra.mxu0 0.0
    %265 = vmatprep.subr.mxu0 0.0
    %266 = vmatpush1.msra.mxu0 0.0
    %267 = vmatprep.subr.mxu0 0.0
    %268 = vmatpush1.msra.mxu0 0.0
    %269 = vmatprep.subr.mxu0 0.0
    %270 = vmatpush1.msra.mxu0 0.0
    %271 = vmatprep.subr.mxu0 0.0
    %272 = vmatpush1.msra.mxu0 0.0
    %273 = vmatprep.subr.mxu0 0.0
    %274 = vmatpush1.msra.mxu0 0.0
    %275 = vmatprep.subr.mxu0 0.0
    %276 = vmatpush1.msra.mxu0 0.0
    %277 = vmatprep.subr.mxu0 0.0
    %278 = vmatpush1.msra.mxu0 0.0
    %279 = vmatprep.subr.mxu0 0.0
    %280 = vmatpush1.msra.mxu0 0.0
    %281 = vmatprep.subr.mxu0 0.0
    %282 = vmatpush1.msra.mxu0 0.0
    %283 = vmatprep.mubr.f32.mxu0 0.0
    %284 = vmatmul.mubr.f32.gmra.mrb[0].mxu0 %v110
    %v285 = vpop.f32.mrb[0].mxu0
    %v286 = vadd.f32 %v87, %v285
    %v287 = vpop.f32.mrb[0].mxu0
    %v288 = vadd.f32 %v87, %v287
    %289 = vmatprep.mubr.f32.mxu0 0.0
    %290 = vmatmul.mubr.f32.gmra.mrb[0].mxu0 %v113
    %v291 = vpop.f32.mrb[0].mxu0
    %v292 = vadd.f32 %v92, %v291
    %v293 = vpop.f32.mrb[0].mxu0
    %v294 = vadd.f32 %v92, %v293
    %295 = vmatprep.mubr.f32.mxu0 0.0
    %296 = vmatmul.mubr.f32.gmra.mrb[0].mxu0 %v116
    %v297 = vpop.f32.mrb[0].mxu0
    %v298 = vadd.f32 %v97, %v297
    %v299 = vpop.f32.mrb[0].mxu0
    %v300 = vadd.f32 %v97, %v299
    %301 = vmatprep.mubr.f32.mxu0 0.0
    %302 = vmatmul.mubr.f32.gmra.mrb[0].mxu0 %v119
    %v303 = vpop.f32.mrb[0].mxu0
    %v304 = vadd.f32 %v102, %v303
    %v305 = vpop.f32.mrb[0].mxu0
    %v306 = vadd.f32 %v102, %v305
    %307 = vdwg.mxu0
    %vm308 = vcmp.ge.f32.partialorder %v197, 0.0
    %vm309 = vcmp.ge.f32.partialorder %v199, 0.0
    %vm310 = vcmp.ge.f32.partialorder %v286, 0.0
    %vm311 = vcmp.ge.f32.partialorder %v288, 0.0
    %vm312 = vcmp.ge.f32.partialorder %v203, 0.0
    %vm313 = vcmp.ge.f32.partialorder %v205, 0.0
    %vm314 = vcmp.ge.f32.partialorder %v292, 0.0
    %vm315 = vcmp.ge.f32.partialorder %v294, 0.0
    %vm316 = vcmp.ge.f32.partialorder %v209, 0.0
    %vm317 = vcmp.ge.f32.partialorder %v211, 0.0
    %vm318 = vcmp.ge.f32.partialorder %v298, 0.0
    %vm319 = vcmp.ge.f32.partialorder %v300, 0.0
    %vm320 = vcmp.ge.f32.partialorder %v215, 0.0
    %vm321 = vcmp.ge.f32.partialorder %v217, 0.0
    %vm322 = vcmp.ge.f32.partialorder %v304, 0.0
    %vm323 = vcmp.ge.f32.partialorder %v306, 0.0
    %v324 = vmul.f32 %v197, 0.2
    %v325 = vmul.f32 %v199, 0.2
    %v326 = vmul.f32 %v286, 0.2
    %v327 = vmul.f32 %v288, 0.2
    %v328 = vmul.f32 %v203, 0.2
    %v329 = vmul.f32 %v205, 0.2
    %v330 = vmul.f32 %v292, 0.2
    %v331 = vmul.f32 %v294, 0.2
    %v332 = vmul.f32 %v209, 0.2
    %v333 = vmul.f32 %v211, 0.2
    %v334 = vmul.f32 %v298, 0.2
    %v335 = vmul.f32 %v300, 0.2
    %v336 = vmul.f32 %v215, 0.2
    %v337 = vmul.f32 %v217, 0.2
    %v338 = vmul.f32 %v304, 0.2
    %v339 = vmul.f32 %v306, 0.2
    %v340 = vsel %vm308, %v197, %v324
    %v341 = vsel %vm309, %v199, %v325
    %v342 = vsel %vm310, %v286, %v326
    %v343 = vsel %vm311, %v288, %v327
    %v344 = vsel %vm312, %v203, %v328
    %v345 = vsel %vm313, %v205, %v329
    %v346 = vsel %vm314, %v292, %v330
    %v347 = vsel %vm315, %v294, %v331
    %v348 = vsel %vm316, %v209, %v332
    %v349 = vsel %vm317, %v211, %v333
    %v350 = vsel %vm318, %v298, %v334
    %v351 = vsel %vm319, %v300, %v335
    %v352 = vsel %vm320, %v215, %v336
    %v353 = vsel %vm321, %v217, %v337
    %v354 = vsel %vm322, %v304, %v338
    %v355 = vsel %vm323, %v306, %v339
    %v356 = vld [vmem:[#allocation8] sm:$0xff]
    %v357 = vld [vmem:[#allocation8 + $0x8] sm:$0xff]
    %v358 = vld [vmem:[#allocation8 + $0x10] sm:$0xff]
    %v359 = vld [vmem:[#allocation8 + $0x18] sm:$0xff]
    %v360 = vld [vmem:[#allocation8 + $0x20] sm:$0xff]
    %v361 = vld [vmem:[#allocation8 + $0x28] sm:$0xff]
    %v362 = vld [vmem:[#allocation8 + $0x30] sm:$0xff]
    %v363 = vld [vmem:[#allocation8 + $0x38] sm:$0xff]
    %vm364 = vcmask 261120
    %v366 = vsel %vm364, %v356, 0
    %v369 = vsel %vm364, %v357, 0
    %v372 = vsel %vm364, %v358, 0
    %v375 = vsel %vm364, %v359, 0
    %v378 = vsel %vm364, %v360, 0
    %v381 = vsel %vm364, %v361, 0
    %v384 = vsel %vm364, %v362, 0
    %v387 = vsel %vm364, %v363, 0
    %389 = vmatprep.subr.mxu0 %v341
    %390 = vmatpush1.msra.mxu0 %v340
    %391 = vmatprep.subr.mxu0 %v345
    %392 = vmatpush1.msra.mxu0 %v344
    %393 = vmatprep.subr.mxu0 %v349
    %394 = vmatpush1.msra.mxu0 %v348
    %395 = vmatprep.subr.mxu0 %v353
    %396 = vmatpush1.msra.mxu0 %v352
    %397 = vmatprep.subr.mxu0 0.0
    %398 = vmatpush1.msra.mxu0 0.0
    %399 = vmatprep.subr.mxu0 0.0
    %400 = vmatpush1.msra.mxu0 0.0
    %401 = vmatprep.subr.mxu0 0.0
    %402 = vmatpush1.msra.mxu0 0.0
    %403 = vmatprep.subr.mxu0 0.0
    %404 = vmatpush1.msra.mxu0 0.0
    %405 = vmatprep.subr.mxu0 0.0
    %406 = vmatpush1.msra.mxu0 0.0
    %407 = vmatprep.subr.mxu0 0.0
    %408 = vmatpush1.msra.mxu0 0.0
    %409 = vmatprep.subr.mxu0 0.0
    %410 = vmatpush1.msra.mxu0 0.0
    %411 = vmatprep.subr.mxu0 0.0
    %412 = vmatpush1.msra.mxu0 0.0
    %413 = vmatprep.subr.mxu0 0.0
    %414 = vmatpush1.msra.mxu0 0.0
    %415 = vmatprep.subr.mxu0 0.0
    %416 = vmatpush1.msra.mxu0 0.0
    %417 = vmatprep.subr.mxu0 0.0
    %418 = vmatpush1.msra.mxu0 0.0
    %419 = vmatprep.subr.mxu0 0.0
    %420 = vmatpush1.msra.mxu0 0.0
    %421 = vmatprep.subr.mxu0 0.0
    %422 = vmatpush1.msra.mxu0 0.0
    %423 = vmatprep.subr.mxu0 0.0
    %424 = vmatpush1.msra.mxu0 0.0
    %425 = vmatprep.subr.mxu0 0.0
    %426 = vmatpush1.msra.mxu0 0.0
    %427 = vmatprep.subr.mxu0 0.0
    %428 = vmatpush1.msra.mxu0 0.0
    %429 = vmatprep.subr.mxu0 0.0
    %430 = vmatpush1.msra.mxu0 0.0
    %431 = vmatprep.subr.mxu0 0.0
    %432 = vmatpush1.msra.mxu0 0.0
    %433 = vmatprep.subr.mxu0 0.0
    %434 = vmatpush1.msra.mxu0 0.0
    %435 = vmatprep.subr.mxu0 0.0
    %436 = vmatpush1.msra.mxu0 0.0
    %437 = vmatprep.subr.mxu0 0.0
    %438 = vmatpush1.msra.mxu0 0.0
    %439 = vmatprep.subr.mxu0 0.0
    %440 = vmatpush1.msra.mxu0 0.0
    %441 = vmatprep.subr.mxu0 0.0
    %442 = vmatpush1.msra.mxu0 0.0
    %443 = vmatprep.subr.mxu0 0.0
    %444 = vmatpush1.msra.mxu0 0.0
    %445 = vmatprep.subr.mxu0 0.0
    %446 = vmatpush1.msra.mxu0 0.0
    %447 = vmatprep.subr.mxu0 0.0
    %448 = vmatpush1.msra.mxu0 0.0
    %449 = vmatprep.subr.mxu0 0.0
    %450 = vmatpush1.msra.mxu0 0.0
    %451 = vmatprep.subr.mxu0 0.0
    %452 = vmatpush1.msra.mxu0 0.0
    %453 = vmatprep.mubr.f32.mxu0 0.0
    %454 = vmatmul.mubr.f32.gmra.mrb[0].mxu0 %v366
    %v455 = vpop.f32.mrb[0].mxu0
    %v456 = vadd.f32 0.0, %v455
    %v457 = vpop.f32.mrb[0].mxu0
    %v458 = vadd.f32 0.0, %v457
    %459 = vmatprep.mubr.f32.mxu0 0.0
    %460 = vmatmul.mubr.f32.gmra.mrb[0].mxu0 %v369
    %v461 = vpop.f32.mrb[0].mxu0
    %v462 = vadd.f32 0.0, %v461
    %v463 = vpop.f32.mrb[0].mxu0
    %v464 = vadd.f32 0.0, %v463
    %465 = vmatprep.mubr.f32.mxu0 0.0
    %466 = vmatmul.mubr.f32.gmra.mrb[0].mxu0 %v372
    %v467 = vpop.f32.mrb[0].mxu0
    %v468 = vadd.f32 0.0, %v467
    %v469 = vpop.f32.mrb[0].mxu0
    %v470 = vadd.f32 0.0, %v469
    %471 = vmatprep.mubr.f32.mxu0 0.0
    %472 = vmatmul.mubr.f32.gmra.mrb[0].mxu0 %v375
    %v473 = vpop.f32.mrb[0].mxu0
    %v474 = vadd.f32 0.0, %v473
    %v475 = vpop.f32.mrb[0].mxu0
    %v476 = vadd.f32 0.0, %v475
    %477 = vmatprep.mubr.f32.mxu0 0.0
    %478 = vmatmul.mubr.f32.gmra.mrb[0].mxu0 %v378
    %v479 = vpop.f32.mrb[0].mxu0
    %v480 = vadd.f32 0.0, %v479
    %v481 = vpop.f32.mrb[0].mxu0
    %v482 = vadd.f32 0.0, %v481
    %483 = vmatprep.mubr.f32.mxu0 0.0
    %484 = vmatmul.mubr.f32.gmra.mrb[0].mxu0 %v381
    %v485 = vpop.f32.mrb[0].mxu0
    %v486 = vadd.f32 0.0, %v485
    %v487 = vpop.f32.mrb[0].mxu0
    %v488 = vadd.f32 0.0, %v487
    %489 = vmatprep.mubr.f32.mxu0 0.0
    %490 = vmatmul.mubr.f32.gmra.mrb[0].mxu0 %v384
    %v491 = vpop.f32.mrb[0].mxu0
    %v492 = vadd.f32 0.0, %v491
    %v493 = vpop.f32.mrb[0].mxu0
    %v494 = vadd.f32 0.0, %v493
    %495 = vmatprep.mubr.f32.mxu0 0.0
    %496 = vmatmul.mubr.f32.gmra.mrb[0].mxu0 %v387
    %v497 = vpop.f32.mrb[0].mxu0
    %v498 = vadd.f32 0.0, %v497
    %v499 = vpop.f32.mrb[0].mxu0
    %v500 = vadd.f32 0.0, %v499
    %501 = vdwg.mxu0
    %502 = vmatprep.subr.mxu0 %v343
    %503 = vmatpush1.msra.mxu0 %v342
    %504 = vmatprep.subr.mxu0 %v347
    %505 = vmatpush1.msra.mxu0 %v346
    %506 = vmatprep.subr.mxu0 %v351
    %507 = vmatpush1.msra.mxu0 %v350
    %508 = vmatprep.subr.mxu0 %v355
    %509 = vmatpush1.msra.mxu0 %v354
    %510 = vmatprep.subr.mxu0 0.0
    %511 = vmatpush1.msra.mxu0 0.0
    %512 = vmatprep.subr.mxu0 0.0
    %513 = vmatpush1.msra.mxu0 0.0
    %514 = vmatprep.subr.mxu0 0.0
    %515 = vmatpush1.msra.mxu0 0.0
    %516 = vmatprep.subr.mxu0 0.0
    %517 = vmatpush1.msra.mxu0 0.0
    %518 = vmatprep.subr.mxu0 0.0
    %519 = vmatpush1.msra.mxu0 0.0
    %520 = vmatprep.subr.mxu0 0.0
    %521 = vmatpush1.msra.mxu0 0.0
    %522 = vmatprep.subr.mxu0 0.0
    %523 = vmatpush1.msra.mxu0 0.0
    %524 = vmatprep.subr.mxu0 0.0
    %525 = vmatpush1.msra.mxu0 0.0
    %526 = vmatprep.subr.mxu0 0.0
    %527 = vmatpush1.msra.mxu0 0.0
    %528 = vmatprep.subr.mxu0 0.0
    %529 = vmatpush1.msra.mxu0 0.0
    %530 = vmatprep.subr.mxu0 0.0
    %531 = vmatpush1.msra.mxu0 0.0
    %532 = vmatprep.subr.mxu0 0.0
    %533 = vmatpush1.msra.mxu0 0.0
    %534 = vmatprep.subr.mxu0 0.0
    %535 = vmatpush1.msra.mxu0 0.0
    %536 = vmatprep.subr.mxu0 0.0
    %537 = vmatpush1.msra.mxu0 0.0
    %538 = vmatprep.subr.mxu0 0.0
    %539 = vmatpush1.msra.mxu0 0.0
    %540 = vmatprep.subr.mxu0 0.0
    %541 = vmatpush1.msra.mxu0 0.0
    %542 = vmatprep.subr.mxu0 0.0
    %543 = vmatpush1.msra.mxu0 0.0
    %544 = vmatprep.subr.mxu0 0.0
    %545 = vmatpush1.msra.mxu0 0.0
    %546 = vmatprep.subr.mxu0 0.0
    %547 = vmatpush1.msra.mxu0 0.0
    %548 = vmatprep.subr.mxu0 0.0
    %549 = vmatpush1.msra.mxu0 0.0
    %550 = vmatprep.subr.mxu0 0.0
    %551 = vmatpush1.msra.mxu0 0.0
    %552 = vmatprep.subr.mxu0 0.0
    %553 = vmatpush1.msra.mxu0 0.0
    %554 = vmatprep.subr.mxu0 0.0
    %555 = vmatpush1.msra.mxu0 0.0
    %556 = vmatprep.subr.mxu0 0.0
    %557 = vmatpush1.msra.mxu0 0.0
    %558 = vmatprep.subr.mxu0 0.0
    %559 = vmatpush1.msra.mxu0 0.0
    %560 = vmatprep.subr.mxu0 0.0
    %561 = vmatpush1.msra.mxu0 0.0
    %562 = vmatprep.subr.mxu0 0.0
    %563 = vmatpush1.msra.mxu0 0.0
    %564 = vmatprep.subr.mxu0 0.0
    %565 = vmatpush1.msra.mxu0 0.0
    %566 = vmatprep.mubr.f32.mxu0 0.0
    %567 = vmatmul.mubr.f32.gmra.mrb[0].mxu0 %v366
    %v568 = vpop.f32.mrb[0].mxu0
    %v569 = vadd.f32 0.0, %v568
    %v570 = vpop.f32.mrb[0].mxu0
    %v571 = vadd.f32 0.0, %v570
    %572 = vmatprep.mubr.f32.mxu0 0.0
    %573 = vmatmul.mubr.f32.gmra.mrb[0].mxu0 %v369
    %v574 = vpop.f32.mrb[0].mxu0
    %v575 = vadd.f32 0.0, %v574
    %v576 = vpop.f32.mrb[0].mxu0
    %v577 = vadd.f32 0.0, %v576
    %578 = vmatprep.mubr.f32.mxu0 0.0
    %579 = vmatmul.mubr.f32.gmra.mrb[0].mxu0 %v372
    %v580 = vpop.f32.mrb[0].mxu0
    %v581 = vadd.f32 0.0, %v580
    %v582 = vpop.f32.mrb[0].mxu0
    %v583 = vadd.f32 0.0, %v582
    %584 = vmatprep.mubr.f32.mxu0 0.0
    %585 = vmatmul.mubr.f32.gmra.mrb[0].mxu0 %v375
    %v586 = vpop.f32.mrb[0].mxu0
    %v587 = vadd.f32 0.0, %v586
    %v588 = vpop.f32.mrb[0].mxu0
    %v589 = vadd.f32 0.0, %v588
    %590 = vmatprep.mubr.f32.mxu0 0.0
    %591 = vmatmul.mubr.f32.gmra.mrb[0].mxu0 %v378
    %v592 = vpop.f32.mrb[0].mxu0
    %v593 = vadd.f32 0.0, %v592
    %v594 = vpop.f32.mrb[0].mxu0
    %v595 = vadd.f32 0.0, %v594
    %596 = vmatprep.mubr.f32.mxu0 0.0
    %597 = vmatmul.mubr.f32.gmra.mrb[0].mxu0 %v381
    %v598 = vpop.f32.mrb[0].mxu0
    %v599 = vadd.f32 0.0, %v598
    %v600 = vpop.f32.mrb[0].mxu0
    %v601 = vadd.f32 0.0, %v600
    %602 = vmatprep.mubr.f32.mxu0 0.0
    %603 = vmatmul.mubr.f32.gmra.mrb[0].mxu0 %v384
    %v604 = vpop.f32.mrb[0].mxu0
    %v605 = vadd.f32 0.0, %v604
    %v606 = vpop.f32.mrb[0].mxu0
    %v607 = vadd.f32 0.0, %v606
    %608 = vmatprep.mubr.f32.mxu0 0.0
    %609 = vmatmul.mubr.f32.gmra.mrb[0].mxu0 %v387
    %v610 = vpop.f32.mrb[0].mxu0
    %v611 = vadd.f32 0.0, %v610
    %v612 = vpop.f32.mrb[0].mxu0
    %v613 = vadd.f32 0.0, %v612
    %614 = vdwg.mxu0
    %v615 = vadd.f32 %v456, %v458
    %v616 = vadd.f32 %v615, %v569
    %v617 = vadd.f32 %v616, %v571
    %618 = vadd.xlane.f32.xlu0 %v617
    %v619 = vpop.xlane.xlu0 %618
    %v620 = vadd.f32 %v462, %v464
    %v621 = vadd.f32 %v620, %v575
    %v622 = vadd.f32 %v621, %v577
    %623 = vadd.xlane.f32.xlu0 %v622
    %v624 = vpop.xlane.xlu0 %623
    %v625 = vadd.f32 %v468, %v470
    %v626 = vadd.f32 %v625, %v581
    %v627 = vadd.f32 %v626, %v583
    %628 = vadd.xlane.f32.xlu0 %v627
    %v629 = vpop.xlane.xlu0 %628
    %v630 = vadd.f32 %v474, %v476
    %v631 = vadd.f32 %v630, %v587
    %v632 = vadd.f32 %v631, %v589
    %633 = vadd.xlane.f32.xlu0 %v632
    %v634 = vpop.xlane.xlu0 %633
    %v635 = vadd.f32 %v480, %v482
    %v636 = vadd.f32 %v635, %v593
    %v637 = vadd.f32 %v636, %v595
    %638 = vadd.xlane.f32.xlu0 %v637
    %v639 = vpop.xlane.xlu0 %638
    %v640 = vadd.f32 %v486, %v488
    %v641 = vadd.f32 %v640, %v599
    %v642 = vadd.f32 %v641, %v601
    %643 = vadd.xlane.f32.xlu0 %v642
    %v644 = vpop.xlane.xlu0 %643
    %v645 = vadd.f32 %v492, %v494
    %v646 = vadd.f32 %v645, %v605
    %v647 = vadd.f32 %v646, %v607
    %648 = vadd.xlane.f32.xlu0 %v647
    %v649 = vpop.xlane.xlu0 %648
    %v650 = vadd.f32 %v498, %v500
    %v651 = vadd.f32 %v650, %v611
    %v652 = vadd.f32 %v651, %v613
    %653 = vadd.xlane.f32.xlu0 %v652
    %v654 = vpop.xlane.xlu0 %653
    %vm655 = vcmask 7168
    %656 = vst.msk [vmem:[#allocation10] sm:$0xff] %vm655, %v619
    %657 = vst.msk [vmem:[#allocation10 + $0x8] sm:$0xff] %vm655, %v624
    %658 = vst.msk [vmem:[#allocation10 + $0x10] sm:$0xff] %vm655, %v629
    %659 = vst.msk [vmem:[#allocation10 + $0x18] sm:$0xff] %vm655, %v634
    %660 = vst.msk [vmem:[#allocation10 + $0x20] sm:$0xff] %vm655, %v639
    %661 = vst.msk [vmem:[#allocation10 + $0x28] sm:$0xff] %vm655, %v644
    %662 = vst.msk [vmem:[#allocation10 + $0x30] sm:$0xff] %vm655, %v649
    %663 = vst.msk [vmem:[#allocation10 + $0x38] sm:$0xff] %vm655, %v654
    %v664 = vmul.f32 %v456, %v456
    %v665 = vmul.f32 %v458, %v458
    %v666 = vmul.f32 %v569, %v569
    %v667 = vmul.f32 %v571, %v571
    %v668 = vmul.f32 %v462, %v462
    %v669 = vmul.f32 %v464, %v464
    %v670 = vmul.f32 %v575, %v575
    %v671 = vmul.f32 %v577, %v577
    %v672 = vmul.f32 %v468, %v468
    %v673 = vmul.f32 %v470, %v470
    %v674 = vmul.f32 %v581, %v581
    %v675 = vmul.f32 %v583, %v583
    %v676 = vmul.f32 %v474, %v474
    %v677 = vmul.f32 %v476, %v476
    %v678 = vmul.f32 %v587, %v587
    %v679 = vmul.f32 %v589, %v589
    %v680 = vmul.f32 %v480, %v480
    %v681 = vmul.f32 %v482, %v482
    %v682 = vmul.f32 %v593, %v593
    %v683 = vmul.f32 %v595, %v595
    %v684 = vmul.f32 %v486, %v486
    %v685 = vmul.f32 %v488, %v488
    %v686 = vmul.f32 %v599, %v599
    %v687 = vmul.f32 %v601, %v601
    %v688 = vmul.f32 %v492, %v492
    %v689 = vmul.f32 %v494, %v494
    %v690 = vmul.f32 %v605, %v605
    %v691 = vmul.f32 %v607, %v607
    %v692 = vmul.f32 %v498, %v498
    %v693 = vmul.f32 %v500, %v500
    %v694 = vmul.f32 %v611, %v611
    %v695 = vmul.f32 %v613, %v613
    %v696 = vadd.f32 %v664, %v665
    %v697 = vadd.f32 %v696, %v666
    %v698 = vadd.f32 %v697, %v667
    %699 = vadd.xlane.f32.xlu0 %v698
    %v700 = vpop.xlane.xlu0 %699
    %v701 = vadd.f32 %v668, %v669
    %v702 = vadd.f32 %v701, %v670
    %v703 = vadd.f32 %v702, %v671
    %704 = vadd.xlane.f32.xlu0 %v703
    %v705 = vpop.xlane.xlu0 %704
    %v706 = vadd.f32 %v672, %v673
    %v707 = vadd.f32 %v706, %v674
    %v708 = vadd.f32 %v707, %v675
    %709 = vadd.xlane.f32.xlu0 %v708
    %v710 = vpop.xlane.xlu0 %709
    %v711 = vadd.f32 %v676, %v677
    %v712 = vadd.f32 %v711, %v678
    %v713 = vadd.f32 %v712, %v679
    %714 = vadd.xlane.f32.xlu0 %v713
    %v715 = vpop.xlane.xlu0 %714
    %v716 = vadd.f32 %v680, %v681
    %v717 = vadd.f32 %v716, %v682
    %v718 = vadd.f32 %v717, %v683
    %719 = vadd.xlane.f32.xlu0 %v718
    %v720 = vpop.xlane.xlu0 %719
    %v721 = vadd.f32 %v684, %v685
    %v722 = vadd.f32 %v721, %v686
    %v723 = vadd.f32 %v722, %v687
    %724 = vadd.xlane.f32.xlu0 %v723
    %v725 = vpop.xlane.xlu0 %724
    %v726 = vadd.f32 %v688, %v689
    %v727 = vadd.f32 %v726, %v690
    %v728 = vadd.f32 %v727, %v691
    %729 = vadd.xlane.f32.xlu0 %v728
    %v730 = vpop.xlane.xlu0 %729
    %v731 = vadd.f32 %v692, %v693
    %v732 = vadd.f32 %v731, %v694
    %v733 = vadd.f32 %v732, %v695
    %734 = vadd.xlane.f32.xlu0 %v733
    %v735 = vpop.xlane.xlu0 %734
    %736 = vst.msk [vmem:[#allocation11] sm:$0xff] %vm655, %v700
    %737 = vst.msk [vmem:[#allocation11 + $0x8] sm:$0xff] %vm655, %v705
    %738 = vst.msk [vmem:[#allocation11 + $0x10] sm:$0xff] %vm655, %v710
    %739 = vst.msk [vmem:[#allocation11 + $0x18] sm:$0xff] %vm655, %v715
    %740 = vst.msk [vmem:[#allocation11 + $0x20] sm:$0xff] %vm655, %v720
    %741 = vst.msk [vmem:[#allocation11 + $0x28] sm:$0xff] %vm655, %v725
    %742 = vst.msk [vmem:[#allocation11 + $0x30] sm:$0xff] %vm655, %v730
    %743 = vst.msk [vmem:[#allocation11 + $0x38] sm:$0xff] %vm655, %v735
    // Predicated region
    $region34: #{pixel_discriminator.2} parent=1 // pred_check
      _
    $region35: #{pixel_discriminator.2} parent=1 // pred_check_branch
      %745 = sbr.rel (0) target = $region37
    $region36: #{pixel_discriminator.2} parent=1 // pred_region
      %s747 = ssub.s32 1024, 1024
      %748 = vsyncadd [#allocation4], %s747
      %s749 = sshll.u32 [#allocation10], 4
      %s750 = int_to_ptr.vmem [resolvable:$true] %s749
      %755 = dma.vmem_to_hbm [thread:$0]  %s750, 1024, %s4, [#allocation4], 128, 128, 8
    $region37: #{pixel_discriminator.2} parent=1 // pred_fallthru
      _
    // Predicated region
    $region38: #{pixel_discriminator.2} parent=1 // pred_check
      _
    $region39: #{pixel_discriminator.2} parent=1 // pred_check_branch
      %757 = sbr.rel (0) target = $region41
    $region40: #{pixel_discriminator.2} parent=1 // pred_region
      %s759 = ssub.s32 1024, 1024
      %760 = vsyncadd [#allocation12], %s759
      %s761 = sshll.u32 [#allocation11], 4
      %s762 = int_to_ptr.vmem [resolvable:$true] %s761
      %767 = dma.vmem_to_hbm [thread:$0]  %s762, 1024, %s5, [#allocation12], 128, 128, 8
    $region41: #{pixel_discriminator.2} parent=1 // pred_fallthru
      _
    // Predicated region
    $region42: #{pixel_discriminator.2} parent=1 // pred_check
      _
    $region43: #{pixel_discriminator.2} parent=1 // pred_check_branch
      %769 = sbr.rel (0) target = $region45
    $region44: #{pixel_discriminator.2} parent=1 // pred_region
      %770 = dma.done [#allocation4], 1024
    $region45: #{pixel_discriminator.2} parent=1 // pred_fallthru
      _
    // Predicated region
    $region46: #{pixel_discriminator.2} parent=1 // pred_check
      _
    $region47: #{pixel_discriminator.2} parent=1 // pred_check_branch
      %772 = sbr.rel (0) target = $region49
    $region48: #{pixel_discriminator.2} parent=1 // pred_region
      %773 = dma.done [#allocation12], 1024
    $region49: #{pixel_discriminator.2} parent=1 // pred_fallthru
      _
    %774 = vsyncpa [#allocation3], 1
    %775 = vsyncpa [#allocation6], 1
    %776 = vsyncpa [#allocation9], 1
    %777 = vsyncpa [#allocation4], 1
    %778 = vsyncpa [#allocation12], 1

// kernel: pixel_discriminator.3
$region0: #{pixel_discriminator.3}
  #allocation0 [shape = 'u32[]', space=smem, size = 0x4, offset = 0x4, fixed_abs, tag = 'smem constant byte address 0x4 - core index']
  #allocation1 [shape = 'u32[144,128]{1,0:T(1,128)}', space=vmem, size = 0x12000, scoped, tag = 'internal scratch']
  %s0 = inlined_call_operand.hbm [shape: f32[4,512], index: 0, kind: input, shape index: {}]
  %s1 = inlined_call_operand.hbm [shape: f32[32,4], index: 1, kind: input, shape index: {}]
  %s2 = inlined_call_operand.hbm [shape: f32[64,32], index: 2, kind: input, shape index: {}]
  %s3 = inlined_call_operand.hbm [shape: f32[64,3], index: 3, kind: input, shape index: {}]
  %s4 = inlined_call_operand.hbm [shape: f32[1,64], index: 4, kind: input, shape index: {}]
  %s5 = inlined_call_operand.hbm [shape: f32[1,512], index: 5, kind: output, shape index: {}]
  %s6 = sld [smem:[#allocation0]]
  $region50: #{pixel_discriminator.3} parent=0
    _
  %s8 = ssub.s32 1, %s6
  %s9 = scalar_select 0, %s8, %s6
  $region1: #{pixel_discriminator.3} parent=0
    #allocation2 [shape = 'u8[8192]{0}', space=vmem, size = 0x2000, scoped, tag = 'input window, operand 0, single buffered']
    #allocation3 [shape = 's32[1]{0}', space=sflag, size = 0x4, scoped, tag = 'scoped memory for pixel_discriminator.3']
    #allocation4 [shape = 's32[1]{0}', space=sflag, size = 0x4, scoped, tag = 'scoped memory for pixel_discriminator.3']
    #allocation5 [shape = 'u8[16384]{0}', space=vmem, size = 0x4000, scoped, tag = 'input window, operand 1, single buffered']
    #allocation6 [shape = 's32[1]{0}', space=sflag, size = 0x4, scoped, tag = 'scoped memory for pixel_discriminator.3']
    #allocation7 [shape = 'u8[32768]{0}', space=vmem, size = 0x8000, scoped, tag = 'input window, operand 2, single buffered']
    #allocation8 [shape = 'u8[32768]{0}', space=vmem, size = 0x8000, scoped, tag = 'input window, operand 3, single buffered']
    #allocation9 [shape = 's32[1]{0}', space=sflag, size = 0x4, scoped, tag = 'scoped memory for pixel_discriminator.3']
    #allocation10 [shape = 'u8[512]{0}', space=vmem, size = 0x400, scoped, tag = 'input window, operand 4, single buffered']
    #allocation11 [shape = 'u8[2048]{0}', space=vmem, size = 0x800, scoped, tag = 'output window, operand 0, single buffered']
    %10 = vsyncpa [#allocation3], 0
    %11 = vsyncpa [#allocation6], 0
    %12 = vsyncpa [#allocation9], 0
    %13 = vsyncpa [#allocation4], 0
    // Predicated region
    $region2: #{pixel_discriminator.3} parent=1 // pred_check
      _
    $region3: #{pixel_discriminator.3} parent=1 // pred_check_branch
      %15 = sbr.rel (0) target = $region5
    $region4: #{pixel_discriminator.3} parent=1 // pred_region
      %s17 = ssub.s32 256, 256
      %18 = vsyncadd [#allocation3], %s17
      %s20 = sshll.u32 [#allocation2], 4
      %s21 = int_to_ptr.vmem [resolvable:$true] %s20
      %23 = dma.hbm_to_vmem [thread:$0]  %s0, 256, %s21, [#allocation3]
    $region5: #{pixel_discriminator.3} parent=1 // pred_fallthru
      _
    // Predicated region
    $region6: #{pixel_discriminator.3} parent=1 // pred_check
      _
    $region7: #{pixel_discriminator.3} parent=1 // pred_check_branch
      %25 = sbr.rel (0) target = $region9
    $region8: #{pixel_discriminator.3} parent=1 // pred_region
      %s27 = ssub.s32 512, 512
      %28 = vsyncadd [#allocation6], %s27
      %s29 = sshll.u32 [#allocation5], 4
      %s30 = int_to_ptr.vmem [resolvable:$true] %s29
      %35 = dma.hbm_to_vmem [thread:$0]  %s1, 512, %s30, [#allocation6], 128, 128, 8
    $region9: #{pixel_discriminator.3} parent=1 // pred_fallthru
      _
    // Predicated region
    $region10: #{pixel_discriminator.3} parent=1 // pred_check
      _
    $region11: #{pixel_discriminator.3} parent=1 // pred_check_branch
      %37 = sbr.rel (0) target = $region13
    $region12: #{pixel_discriminator.3} parent=1 // pred_region
      %s39 = ssub.s32 1024, 1024
      %40 = vsyncadd [#allocation6], %s39
      %s41 = sshll.u32 [#allocation7], 4
      %s42 = int_to_ptr.vmem [resolvable:$true] %s41
      %47 = dma.hbm_to_vmem [thread:$0]  %s2, 1024, %s42, [#allocation6], 128, 128, 8
    $region13: #{pixel_discriminator.3} parent=1 // pred_fallthru
      _
    // Predicated region
    $region14: #{pixel_discriminator.3} parent=1 // pred_check
      _
    $region15: #{pixel_discriminator.3} parent=1 // pred_check_branch
      %49 = sbr.rel (0) target = $region17
    $region16: #{pixel_discriminator.3} parent=1 // pred_region
      %s51 = ssub.s32 1024, 1024
      %52 = vsyncadd [#allocation9], %s51
      %s53 = sshll.u32 [#allocation8], 4
      %s54 = int_to_ptr.vmem [resolvable:$true] %s53
      %59 = dma.hbm_to_vmem [thread:$0]  %s3, 1024, %s54, [#allocation9], 128, 128, 8
    $region17: #{pixel_discriminator.3} parent=1 // pred_fallthru
      _
    // Predicated region
    $region18: #{pixel_discriminator.3} parent=1 // pred_check
      _
    $region19: #{pixel_discriminator.3} parent=1 // pred_check_branch
      %61 = sbr.rel (0) target = $region21
    $region20: #{pixel_discriminator.3} parent=1 // pred_region
      %s63 = ssub.s32 16, 16
      %64 = vsyncadd [#allocation9], %s63
      %s66 = sshll.u32 [#allocation10], 4
      %s67 = int_to_ptr.vmem [resolvable:$true] %s66
      %69 = dma.hbm_to_vmem [thread:$0]  %s4, 16, %s67, [#allocation9]
    $region21: #{pixel_discriminator.3} parent=1 // pred_fallthru
      _
    // Predicated region
    $region22: #{pixel_discriminator.3} parent=1 // pred_check
      _
    $region23: #{pixel_discriminator.3} parent=1 // pred_check_branch
      %71 = sbr.rel (0) target = $region25
    $region24: #{pixel_discriminator.3} parent=1 // pred_region
      %72 = dma.done [#allocation3], 256
    $region25: #{pixel_discriminator.3} parent=1 // pred_fallthru
      _
    // Predicated region
    $region26: #{pixel_discriminator.3} parent=1 // pred_check
      _
    $region27: #{pixel_discriminator.3} parent=1 // pred_check_branch
      %74 = sbr.rel (0) target = $region29
    $region28: #{pixel_discriminator.3} parent=1 // pred_region
      %75 = dma.done [#allocation6], 512
    $region29: #{pixel_discriminator.3} parent=1 // pred_fallthru
      _
    // Predicated region
    $region30: #{pixel_discriminator.3} parent=1 // pred_check
      _
    $region31: #{pixel_discriminator.3} parent=1 // pred_check_branch
      %77 = sbr.rel (0) target = $region33
    $region32: #{pixel_discriminator.3} parent=1 // pred_region
      %78 = dma.done [#allocation6], 1024
    $region33: #{pixel_discriminator.3} parent=1 // pred_fallthru
      _
    // Predicated region
    $region34: #{pixel_discriminator.3} parent=1 // pred_check
      _
    $region35: #{pixel_discriminator.3} parent=1 // pred_check_branch
      %80 = sbr.rel (0) target = $region37
    $region36: #{pixel_discriminator.3} parent=1 // pred_region
      %81 = dma.done [#allocation9], 1024
    $region37: #{pixel_discriminator.3} parent=1 // pred_fallthru
      _
    // Predicated region
    $region38: #{pixel_discriminator.3} parent=1 // pred_check
      _
    $region39: #{pixel_discriminator.3} parent=1 // pred_check_branch
      %83 = sbr.rel (0) target = $region41
    $region40: #{pixel_discriminator.3} parent=1 // pred_region
      %84 = dma.done [#allocation9], 16
    $region41: #{pixel_discriminator.3} parent=1 // pred_fallthru
      _
    %v85 = vld [vmem:[#allocation2] sm:$0xff]
    %v86 = vld [vmem:[#allocation2 + $0x8] sm:$0xff]
    %v87 = vld [vmem:[#allocation8] sm:$0xff]
    %v88 = vld [vmem:[#allocation8 + $0x8] sm:$0xff]
    %v89 = vld [vmem:[#allocation8 + $0x10] sm:$0xff]
    %v90 = vld [vmem:[#allocation8 + $0x18] sm:$0xff]
    %v91 = vld [vmem:[#allocation8 + $0x20] sm:$0xff]
    %v92 = vld [vmem:[#allocation8 + $0x28] sm:$0xff]
    %v93 = vld [vmem:[#allocation8 + $0x30] sm:$0xff]
    %v94 = vld [vmem:[#allocation8 + $0x38] sm:$0xff]
    %v95 = vld [vmem:[#allocation5] sm:$0xff]
    %v96 = vld [vmem:[#allocation5 + $0x8] sm:$0xff]
    %v97 = vld [vmem:[#allocation5 + $0x10] sm:$0xff]
    %v98 = vld [vmem:[#allocation5 + $0x18] sm:$0xff]
    %100 = vset.pattern.permute.xlu0 0
    %101 = vperm.xlu0 %100, %v87
    %v102 = vpop.permute.xlu0 %101
    %105 = vset.pattern.permute.xlu0 0
    %106 = vperm.xlu0 %105, %v88
    %v107 = vpop.permute.xlu0 %106
    %110 = vset.pattern.permute.xlu0 0
    %111 = vperm.xlu0 %110, %v89
    %v112 = vpop.permute.xlu0 %111
    %115 = vset.pattern.permute.xlu0 0
    %116 = vperm.xlu0 %115, %v90
    %v117 = vpop.permute.xlu0 %116
    %v121 = vcombine.high %v85, %v85
    %v122 = vcombine.high %v86, %v86
    %vm123 = vcmask 31744
    %v125 = vsel %vm123, %v95, 0
    %v128 = vsel %vm123, %v96, 0
    %v131 = vsel %vm123, %v97, 0
    %v134 = vsel %vm123, %v98, 0
    %vm136 = vcmask 1043456
    %v137 = vsel %vm136, %v85, 0
    %v139 = vsel %vm136, %v121, 0
    %v141 = vsel %vm136, %v86, 0
    %v143 = vsel %vm136, %v122, 0
    %145 = vmatprep.subr.mxu0 %v139
    %146 = vmatpush1.msra.mxu0 %v137
    %147 = vmatprep.subr.mxu0 0.0
    %148 = vmatpush1.msra.mxu0 0.0
    %149 = vmatprep.subr.mxu0 0.0
    %150 = vmatpush1.msra.mxu0 0.0
    %151 = vmatprep.subr.mxu0 0.0
    %152 = vmatpush1.msra.mxu0 0.0
    %153 = vmatprep.subr.mxu0 0.0
    %154 = vmatpush1.msra.mxu0 0.0
    %155 = vmatprep.subr.mxu0 0.0
    %156 = vmatpush1.msra.mxu0 0.0
    %157 = vmatprep.subr.mxu0 0.0
    %158 = vmatpush1.msra.mxu0 0.0
    %159 = vmatprep.subr.mxu0 0.0
    %160 = vmatpush1.msra.mxu0 0.0
    %161 = vmatprep.subr.mxu0 0.0
    %162 = vmatpush1.msra.mxu0 0.0
    %163 = vmatprep.subr.mxu0 0.0
    %164 = vmatpush1.msra.mxu0 0.0
    %165 = vmatprep.subr.mxu0 0.0
    %166 = vmatpush1.msra.mxu0 0.0
    %167 = vmatprep.subr.mxu0 0.0
    %168 = vmatpush1.msra.mxu0 0.0
    %169 = vmatprep.subr.mxu0 0.0
    %170 = vmatpush1.msra.mxu0 0.0
    %171 = vmatprep.subr.mxu0 0.0
    %172 = vmatpush1.msra.mxu0 0.0
    %173 = vmatprep.subr.mxu0 0.0
    %174 = vmatpush1.msra.mxu0 0.0
    %175 = vmatprep.subr.mxu0 0.0
    %176 = vmatpush1.msra.mxu0 0.0
    %177 = vmatprep.subr.mxu0 0.0
    %178 = vmatpush1.msra.mxu0 0.0
    %179 = vmatprep.subr.mxu0 0.0
    %180 = vmatpush1.msra.mxu0 0.0
    %181 = vmatprep.subr.mxu0 0.0
    %182 = vmatpush1.msra.mxu0 0.0
    %183 = vmatprep.subr.mxu0 0.0
    %184 = vmatpush1.msra.mxu0 0.0
    %185 = vmatprep.subr.mxu0 0.0
    %186 = vmatpush1.msra.mxu0 0.0
    %187 = vmatprep.subr.mxu0 0.0
    %188 = vmatpush1.msra.mxu0 0.0
    %189 = vmatprep.subr.mxu0 0.0
    %190 = vmatpush1.msra.mxu0 0.0
    %191 = vmatprep.subr.mxu0 0.0
    %192 = vmatpush1.msra.mxu0 0.0
    %193 = vmatprep.subr.mxu0 0.0
    %194 = vmatpush1.msra.mxu0 0.0
    %195 = vmatprep.subr.mxu0 0.0
    %196 = vmatpush1.msra.mxu0 0.0
    %197 = vmatprep.subr.mxu0 0.0
    %198 = vmatpush1.msra.mxu0 0.0
    %199 = vmatprep.subr.mxu0 0.0
    %200 = vmatpush1.msra.mxu0 0.0
    %201 = vmatprep.subr.mxu0 0.0
    %202 = vmatpush1.msra.mxu0 0.0
    %203 = vmatprep.subr.mxu0 0.0
    %204 = vmatpush1.msra.mxu0 0.0
    %205 = vmatprep.subr.mxu0 0.0
    %206 = vmatpush1.msra.mxu0 0.0
    %207 = vmatprep.subr.mxu0 0.0
    %208 = vmatpush1.msra.mxu0 0.0
    %209 = vmatprep.mubr.f32.mxu0 0.0
    %210 = vmatmul.mubr.f32.gmra.mrb[0].mxu0 %v125
    %v211 = vpop.f32.mrb[0].mxu0
    %v212 = vadd.f32 %v102, %v211
    %v213 = vpop.f32.mrb[0].mxu0
    %v214 = vadd.f32 %v102, %v213
    %215 = vmatprep.mubr.f32.mxu0 0.0
    %216 = vmatmul.mubr.f32.gmra.mrb[0].mxu0 %v128
    %v217 = vpop.f32.mrb[0].mxu0
    %v218 = vadd.f32 %v107, %v217
    %v219 = vpop.f32.mrb[0].mxu0
    %v220 = vadd.f32 %v107, %v219
    %221 = vmatprep.mubr.f32.mxu0 0.0
    %222 = vmatmul.mubr.f32.gmra.mrb[0].mxu0 %v131
    %v223 = vpop.f32.mrb[0].mxu0
    %v224 = vadd.f32 %v112, %v223
    %v225 = vpop.f32.mrb[0].mxu0
    %v226 = vadd.f32 %v112, %v225
    %227 = vmatprep.mubr.f32.mxu0 0.0
    %228 = vmatmul.mubr.f32.gmra.mrb[0].mxu0 %v134
    %v229 = vpop.f32.mrb[0].mxu0
    %v230 = vadd.f32 %v117, %v229
    %v231 = vpop.f32.mrb[0].mxu0
    %v232 = vadd.f32 %v117, %v231
    %233 = vdwg.mxu0
    %234 = vmatprep.subr.mxu0 %v143
    %235 = vmatpush1.msra.mxu0 %v141
    %236 = vmatprep.subr.mxu0 0.0
    %237 = vmatpush1.msra.mxu0 0.0
    %238 = vmatprep.subr.mxu0 0.0
    %239 = vmatpush1.msra.mxu0 0.0
    %240 = vmatprep.subr.mxu0 0.0
    %241 = vmatpush1.msra.mxu0 0.0
    %242 = vmatprep.subr.mxu0 0.0
    %243 = vmatpush1.msra.mxu0 0.0
    %244 = vmatprep.subr.mxu0 0.0
    %245 = vmatpush1.msra.mxu0 0.0
    %246 = vmatprep.subr.mxu0 0.0
    %247 = vmatpush1.msra.mxu0 0.0
    %248 = vmatprep.subr.mxu0 0.0
    %249 = vmatpush1.msra.mxu0 0.0
    %250 = vmatprep.subr.mxu0 0.0
    %251 = vmatpush1.msra.mxu0 0.0
    %252 = vmatprep.subr.mxu0 0.0
    %253 = vmatpush1.msra.mxu0 0.0
    %254 = vmatprep.subr.mxu0 0.0
    %255 = vmatpush1.msra.mxu0 0.0
    %256 = vmatprep.subr.mxu0 0.0
    %257 = vmatpush1.msra.mxu0 0.0
    %258 = vmatprep.subr.mxu0 0.0
    %259 = vmatpush1.msra.mxu0 0.0
    %260 = vmatprep.subr.mxu0 0.0
    %261 = vmatpush1.msra.mxu0 0.0
    %262 = vmatprep.subr.mxu0 0.0
    %263 = vmatpush1.msra.mxu0 0.0
    %264 = vmatprep.subr.mxu0 0.0
    %265 = vmatpush1.msra.mxu0 0.0
    %266 = vmatprep.subr.mxu0 0.0
    %267 = vmatpush1.msra.mxu0 0.0
    %268 = vmatprep.subr.mxu0 0.0
    %269 = vmatpush1.msra.mxu0 0.0
    %270 = vmatprep.subr.mxu0 0.0
    %271 = vmatpush1.msra.mxu0 0.0
    %272 = vmatprep.subr.mxu0 0.0
    %273 = vmatpush1.msra.mxu0 0.0
    %274 = vmatprep.subr.mxu0 0.0
    %275 = vmatpush1.msra.mxu0 0.0
    %276 = vmatprep.subr.mxu0 0.0
    %277 = vmatpush1.msra.mxu0 0.0
    %278 = vmatprep.subr.mxu0 0.0
    %279 = vmatpush1.msra.mxu0 0.0
    %280 = vmatprep.subr.mxu0 0.0
    %281 = vmatpush1.msra.mxu0 0.0
    %282 = vmatprep.subr.mxu0 0.0
    %283 = vmatpush1.msra.mxu0 0.0
    %284 = vmatprep.subr.mxu0 0.0
    %285 = vmatpush1.msra.mxu0 0.0
    %286 = vmatprep.subr.mxu0 0.0
    %287 = vmatpush1.msra.mxu0 0.0
    %288 = vmatprep.subr.mxu0 0.0
    %289 = vmatpush1.msra.mxu0 0.0
    %290 = vmatprep.subr.mxu0 0.0
    %291 = vmatpush1.msra.mxu0 0.0
    %292 = vmatprep.subr.mxu0 0.0
    %293 = vmatpush1.msra.mxu0 0.0
    %294 = vmatprep.subr.mxu0 0.0
    %295 = vmatpush1.msra.mxu0 0.0
    %296 = vmatprep.subr.mxu0 0.0
    %297 = vmatpush1.msra.mxu0 0.0
    %298 = vmatprep.mubr.f32.mxu0 0.0
    %299 = vmatmul.mubr.f32.gmra.mrb[0].mxu0 %v125
    %v300 = vpop.f32.mrb[0].mxu0
    %v301 = vadd.f32 %v102, %v300
    %v302 = vpop.f32.mrb[0].mxu0
    %v303 = vadd.f32 %v102, %v302
    %304 = vmatprep.mubr.f32.mxu0 0.0
    %305 = vmatmul.mubr.f32.gmra.mrb[0].mxu0 %v128
    %v306 = vpop.f32.mrb[0].mxu0
    %v307 = vadd.f32 %v107, %v306
    %v308 = vpop.f32.mrb[0].mxu0
    %v309 = vadd.f32 %v107, %v308
    %310 = vmatprep.mubr.f32.mxu0 0.0
    %311 = vmatmul.mubr.f32.gmra.mrb[0].mxu0 %v131
    %v312 = vpop.f32.mrb[0].mxu0
    %v313 = vadd.f32 %v112, %v312
    %v314 = vpop.f32.mrb[0].mxu0
    %v315 = vadd.f32 %v112, %v314
    %316 = vmatprep.mubr.f32.mxu0 0.0
    %317 = vmatmul.mubr.f32.gmra.mrb[0].mxu0 %v134
    %v318 = vpop.f32.mrb[0].mxu0
    %v319 = vadd.f32 %v117, %v318
    %v320 = vpop.f32.mrb[0].mxu0
    %v321 = vadd.f32 %v117, %v320
    %322 = vdwg.mxu0
    %vm323 = vcmp.ge.f32.partialorder %v212, 0.0
    %vm324 = vcmp.ge.f32.partialorder %v214, 0.0
    %vm325 = vcmp.ge.f32.partialorder %v301, 0.0
    %vm326 = vcmp.ge.f32.partialorder %v303, 0.0
    %vm327 = vcmp.ge.f32.partialorder %v218, 0.0
    %vm328 = vcmp.ge.f32.partialorder %v220, 0.0
    %vm329 = vcmp.ge.f32.partialorder %v307, 0.0
    %vm330 = vcmp.ge.f32.partialorder %v309, 0.0
    %vm331 = vcmp.ge.f32.partialorder %v224, 0.0
    %vm332 = vcmp.ge.f32.partialorder %v226, 0.0
    %vm333 = vcmp.ge.f32.partialorder %v313, 0.0
    %vm334 = vcmp.ge.f32.partialorder %v315, 0.0
    %vm335 = vcmp.ge.f32.partialorder %v230, 0.0
    %vm336 = vcmp.ge.f32.partialorder %v232, 0.0
    %vm337 = vcmp.ge.f32.partialorder %v319, 0.0
    %vm338 = vcmp.ge.f32.partialorder %v321, 0.0
    %v339 = vmul.f32 %v212, 0.2
    %v340 = vmul.f32 %v214, 0.2
    %v341 = vmul.f32 %v301, 0.2
    %v342 = vmul.f32 %v303, 0.2
    %v343 = vmul.f32 %v218, 0.2
    %v344 = vmul.f32 %v220, 0.2
    %v345 = vmul.f32 %v307, 0.2
    %v346 = vmul.f32 %v309, 0.2
    %v347 = vmul.f32 %v224, 0.2
    %v348 = vmul.f32 %v226, 0.2
    %v349 = vmul.f32 %v313, 0.2
    %v350 = vmul.f32 %v315, 0.2
    %v351 = vmul.f32 %v230, 0.2
    %v352 = vmul.f32 %v232, 0.2
    %v353 = vmul.f32 %v319, 0.2
    %v354 = vmul.f32 %v321, 0.2
    %v355 = vsel %vm323, %v212, %v339
    %v356 = vsel %vm324, %v214, %v340
    %v357 = vsel %vm325, %v301, %v341
    %v358 = vsel %vm326, %v303, %v342
    %v359 = vsel %vm327, %v218, %v343
    %v360 = vsel %vm328, %v220, %v344
    %v361 = vsel %vm329, %v307, %v345
    %v362 = vsel %vm330, %v309, %v346
    %v363 = vsel %vm331, %v224, %v347
    %v364 = vsel %vm332, %v226, %v348
    %v365 = vsel %vm333, %v313, %v349
    %v366 = vsel %vm334, %v315, %v350
    %v367 = vsel %vm335, %v230, %v351
    %v368 = vsel %vm336, %v232, %v352
    %v369 = vsel %vm337, %v319, %v353
    %v370 = vsel %vm338, %v321, %v354
    %v371 = vld [vmem:[#allocation7] sm:$0xff]
    %v372 = vld [vmem:[#allocation7 + $0x8] sm:$0xff]
    %v373 = vld [vmem:[#allocation7 + $0x10] sm:$0xff]
    %v374 = vld [vmem:[#allocation7 + $0x18] sm:$0xff]
    %v375 = vld [vmem:[#allocation7 + $0x20] sm:$0xff]
    %v376 = vld [vmem:[#allocation7 + $0x28] sm:$0xff]
    %v377 = vld [vmem:[#allocation7 + $0x30] sm:$0xff]
    %v378 = vld [vmem:[#allocation7 + $0x38] sm:$0xff]
    %vm379 = vcmask 261120
    %v381 = vsel %vm379, %v371, 0
    %v384 = vsel %vm379, %v372, 0
    %v387 = vsel %vm379, %v373, 0
    %v390 = vsel %vm379, %v374, 0
    %v393 = vsel %vm379, %v375, 0
    %v396 = vsel %vm379, %v376, 0
    %v399 = vsel %vm379, %v377, 0
    %v402 = vsel %vm379, %v378, 0
    %404 = vmatprep.subr.mxu0 %v356
    %405 = vmatpush1.msra.mxu0 %v355
    %406 = vmatprep.subr.mxu0 %v360
    %407 = vmatpush1.msra.mxu0 %v359
    %408 = vmatprep.subr.mxu0 %v364
    %409 = vmatpush1.msra.mxu0 %v363
    %410 = vmatprep.subr.mxu0 %v368
    %411 = vmatpush1.msra.mxu0 %v367
    %412 = vmatprep.subr.mxu0 0.0
    %413 = vmatpush1.msra.mxu0 0.0
    %414 = vmatprep.subr.mxu0 0.0
    %415 = vmatpush1.msra.mxu0 0.0
    %416 = vmatprep.subr.mxu0 0.0
    %417 = vmatpush1.msra.mxu0 0.0
    %418 = vmatprep.subr.mxu0 0.0
    %419 = vmatpush1.msra.mxu0 0.0
    %420 = vmatprep.subr.mxu0 0.0
    %421 = vmatpush1.msra.mxu0 0.0
    %422 = vmatprep.subr.mxu0 0.0
    %423 = vmatpush1.msra.mxu0 0.0
    %424 = vmatprep.subr.mxu0 0.0
    %425 = vmatpush1.msra.mxu0 0.0
    %426 = vmatprep.subr.mxu0 0.0
    %427 = vmatpush1.msra.mxu0 0.0
    %428 = vmatprep.subr.mxu0 0.0
    %429 = vmatpush1.msra.mxu0 0.0
    %430 = vmatprep.subr.mxu0 0.0
    %431 = vmatpush1.msra.mxu0 0.0
    %432 = vmatprep.subr.mxu0 0.0
    %433 = vmatpush1.msra.mxu0 0.0
    %434 = vmatprep.subr.mxu0 0.0
    %435 = vmatpush1.msra.mxu0 0.0
    %436 = vmatprep.subr.mxu0 0.0
    %437 = vmatpush1.msra.mxu0 0.0
    %438 = vmatprep.subr.mxu0 0.0
    %439 = vmatpush1.msra.mxu0 0.0
    %440 = vmatprep.subr.mxu0 0.0
    %441 = vmatpush1.msra.mxu0 0.0
    %442 = vmatprep.subr.mxu0 0.0
    %443 = vmatpush1.msra.mxu0 0.0
    %444 = vmatprep.subr.mxu0 0.0
    %445 = vmatpush1.msra.mxu0 0.0
    %446 = vmatprep.subr.mxu0 0.0
    %447 = vmatpush1.msra.mxu0 0.0
    %448 = vmatprep.subr.mxu0 0.0
    %449 = vmatpush1.msra.mxu0 0.0
    %450 = vmatprep.subr.mxu0 0.0
    %451 = vmatpush1.msra.mxu0 0.0
    %452 = vmatprep.subr.mxu0 0.0
    %453 = vmatpush1.msra.mxu0 0.0
    %454 = vmatprep.subr.mxu0 0.0
    %455 = vmatpush1.msra.mxu0 0.0
    %456 = vmatprep.subr.mxu0 0.0
    %457 = vmatpush1.msra.mxu0 0.0
    %458 = vmatprep.subr.mxu0 0.0
    %459 = vmatpush1.msra.mxu0 0.0
    %460 = vmatprep.subr.mxu0 0.0
    %461 = vmatpush1.msra.mxu0 0.0
    %462 = vmatprep.subr.mxu0 0.0
    %463 = vmatpush1.msra.mxu0 0.0
    %464 = vmatprep.subr.mxu0 0.0
    %465 = vmatpush1.msra.mxu0 0.0
    %466 = vmatprep.subr.mxu0 0.0
    %467 = vmatpush1.msra.mxu0 0.0
    %468 = vmatprep.mubr.f32.mxu0 0.0
    %469 = vmatmul.mubr.f32.gmra.mrb[0].mxu0 %v381
    %v470 = vpop.f32.mrb[0].mxu0
    %v471 = vadd.f32 0.0, %v470
    %v472 = vpop.f32.mrb[0].mxu0
    %v473 = vadd.f32 0.0, %v472
    %474 = vmatprep.mubr.f32.mxu0 0.0
    %475 = vmatmul.mubr.f32.gmra.mrb[0].mxu0 %v384
    %v476 = vpop.f32.mrb[0].mxu0
    %v477 = vadd.f32 0.0, %v476
    %v478 = vpop.f32.mrb[0].mxu0
    %v479 = vadd.f32 0.0, %v478
    %480 = vmatprep.mubr.f32.mxu0 0.0
    %481 = vmatmul.mubr.f32.gmra.mrb[0].mxu0 %v387
    %v482 = vpop.f32.mrb[0].mxu0
    %v483 = vadd.f32 0.0, %v482
    %v484 = vpop.f32.mrb[0].mxu0
    %v485 = vadd.f32 0.0, %v484
    %486 = vmatprep.mubr.f32.mxu0 0.0
    %487 = vmatmul.mubr.f32.gmra.mrb[0].mxu0 %v390
    %v488 = vpop.f32.mrb[0].mxu0
    %v489 = vadd.f32 0.0, %v488
    %v490 = vpop.f32.mrb[0].mxu0
    %v491 = vadd.f32 0.0, %v490
    %492 = vmatprep.mubr.f32.mxu0 0.0
    %493 = vmatmul.mubr.f32.gmra.mrb[0].mxu0 %v393
    %v494 = vpop.f32.mrb[0].mxu0
    %v495 = vadd.f32 0.0, %v494
    %v496 = vpop.f32.mrb[0].mxu0
    %v497 = vadd.f32 0.0, %v496
    %498 = vmatprep.mubr.f32.mxu0 0.0
    %499 = vmatmul.mubr.f32.gmra.mrb[0].mxu0 %v396
    %v500 = vpop.f32.mrb[0].mxu0
    %v501 = vadd.f32 0.0, %v500
    %v502 = vpop.f32.mrb[0].mxu0
    %v503 = vadd.f32 0.0, %v502
    %504 = vmatprep.mubr.f32.mxu0 0.0
    %505 = vmatmul.mubr.f32.gmra.mrb[0].mxu0 %v399
    %v506 = vpop.f32.mrb[0].mxu0
    %v507 = vadd.f32 0.0, %v506
    %v508 = vpop.f32.mrb[0].mxu0
    %v509 = vadd.f32 0.0, %v508
    %510 = vmatprep.mubr.f32.mxu0 0.0
    %511 = vmatmul.mubr.f32.gmra.mrb[0].mxu0 %v402
    %v512 = vpop.f32.mrb[0].mxu0
    %v513 = vadd.f32 0.0, %v512
    %v514 = vpop.f32.mrb[0].mxu0
    %v515 = vadd.f32 0.0, %v514
    %516 = vdwg.mxu0
    %517 = vmatprep.subr.mxu0 %v358
    %518 = vmatpush1.msra.mxu0 %v357
    %519 = vmatprep.subr.mxu0 %v362
    %520 = vmatpush1.msra.mxu0 %v361
    %521 = vmatprep.subr.mxu0 %v366
    %522 = vmatpush1.msra.mxu0 %v365
    %523 = vmatprep.subr.mxu0 %v370
    %524 = vmatpush1.msra.mxu0 %v369
    %525 = vmatprep.subr.mxu0 0.0
    %526 = vmatpush1.msra.mxu0 0.0
    %527 = vmatprep.subr.mxu0 0.0
    %528 = vmatpush1.msra.mxu0 0.0
    %529 = vmatprep.subr.mxu0 0.0
    %530 = vmatpush1.msra.mxu0 0.0
    %531 = vmatprep.subr.mxu0 0.0
    %532 = vmatpush1.msra.mxu0 0.0
    %533 = vmatprep.subr.mxu0 0.0
    %534 = vmatpush1.msra.mxu0 0.0
    %535 = vmatprep.subr.mxu0 0.0
    %536 = vmatpush1.msra.mxu0 0.0
    %537 = vmatprep.subr.mxu0 0.0
    %538 = vmatpush1.msra.mxu0 0.0
    %539 = vmatprep.subr.mxu0 0.0
    %540 = vmatpush1.msra.mxu0 0.0
    %541 = vmatprep.subr.mxu0 0.0
    %542 = vmatpush1.msra.mxu0 0.0
    %543 = vmatprep.subr.mxu0 0.0
    %544 = vmatpush1.msra.mxu0 0.0
    %545 = vmatprep.subr.mxu0 0.0
    %546 = vmatpush1.msra.mxu0 0.0
    %547 = vmatprep.subr.mxu0 0.0
    %548 = vmatpush1.msra.mxu0 0.0
    %549 = vmatprep.subr.mxu0 0.0
    %550 = vmatpush1.msra.mxu0 0.0
    %551 = vmatprep.subr.mxu0 0.0
    %552 = vmatpush1.msra.mxu0 0.0
    %553 = vmatprep.subr.mxu0 0.0
    %554 = vmatpush1.msra.mxu0 0.0
    %555 = vmatprep.subr.mxu0 0.0
    %556 = vmatpush1.msra.mxu0 0.0
    %557 = vmatprep.subr.mxu0 0.0
    %558 = vmatpush1.msra.mxu0 0.0
    %559 = vmatprep.subr.mxu0 0.0
    %560 = vmatpush1.msra.mxu0 0.0
    %561 = vmatprep.subr.mxu0 0.0
    %562 = vmatpush1.msra.mxu0 0.0
    %563 = vmatprep.subr.mxu0 0.0
    %564 = vmatpush1.msra.mxu0 0.0
    %565 = vmatprep.subr.mxu0 0.0
    %566 = vmatpush1.msra.mxu0 0.0
    %567 = vmatprep.subr.mxu0 0.0
    %568 = vmatpush1.msra.mxu0 0.0
    %569 = vmatprep.subr.mxu0 0.0
    %570 = vmatpush1.msra.mxu0 0.0
    %571 = vmatprep.subr.mxu0 0.0
    %572 = vmatpush1.msra.mxu0 0.0
    %573 = vmatprep.subr.mxu0 0.0
    %574 = vmatpush1.msra.mxu0 0.0
    %575 = vmatprep.subr.mxu0 0.0
    %576 = vmatpush1.msra.mxu0 0.0
    %577 = vmatprep.subr.mxu0 0.0
    %578 = vmatpush1.msra.mxu0 0.0
    %579 = vmatprep.subr.mxu0 0.0
    %580 = vmatpush1.msra.mxu0 0.0
    %581 = vmatprep.mubr.f32.mxu0 0.0
    %582 = vmatmul.mubr.f32.gmra.mrb[0].mxu0 %v381
    %v583 = vpop.f32.mrb[0].mxu0
    %v584 = vadd.f32 0.0, %v583
    %v585 = vpop.f32.mrb[0].mxu0
    %v586 = vadd.f32 0.0, %v585
    %587 = vmatprep.mubr.f32.mxu0 0.0
    %588 = vmatmul.mubr.f32.gmra.mrb[0].mxu0 %v384
    %v589 = vpop.f32.mrb[0].mxu0
    %v590 = vadd.f32 0.0, %v589
    %v591 = vpop.f32.mrb[0].mxu0
    %v592 = vadd.f32 0.0, %v591
    %593 = vmatprep.mubr.f32.mxu0 0.0
    %594 = vmatmul.mubr.f32.gmra.mrb[0].mxu0 %v387
    %v595 = vpop.f32.mrb[0].mxu0
    %v596 = vadd.f32 0.0, %v595
    %v597 = vpop.f32.mrb[0].mxu0
    %v598 = vadd.f32 0.0, %v597
    %599 = vmatprep.mubr.f32.mxu0 0.0
    %600 = vmatmul.mubr.f32.gmra.mrb[0].mxu0 %v390
    %v601 = vpop.f32.mrb[0].mxu0
    %v602 = vadd.f32 0.0, %v601
    %v603 = vpop.f32.mrb[0].mxu0
    %v604 = vadd.f32 0.0, %v603
    %605 = vmatprep.mubr.f32.mxu0 0.0
    %606 = vmatmul.mubr.f32.gmra.mrb[0].mxu0 %v393
    %v607 = vpop.f32.mrb[0].mxu0
    %v608 = vadd.f32 0.0, %v607
    %v609 = vpop.f32.mrb[0].mxu0
    %v610 = vadd.f32 0.0, %v609
    %611 = vmatprep.mubr.f32.mxu0 0.0
    %612 = vmatmul.mubr.f32.gmra.mrb[0].mxu0 %v396
    %v613 = vpop.f32.mrb[0].mxu0
    %v614 = vadd.f32 0.0, %v613
    %v615 = vpop.f32.mrb[0].mxu0
    %v616 = vadd.f32 0.0, %v615
    %617 = vmatprep.mubr.f32.mxu0 0.0
    %618 = vmatmul.mubr.f32.gmra.mrb[0].mxu0 %v399
    %v619 = vpop.f32.mrb[0].mxu0
    %v620 = vadd.f32 0.0, %v619
    %v621 = vpop.f32.mrb[0].mxu0
    %v622 = vadd.f32 0.0, %v621
    %623 = vmatprep.mubr.f32.mxu0 0.0
    %624 = vmatmul.mubr.f32.gmra.mrb[0].mxu0 %v402
    %v625 = vpop.f32.mrb[0].mxu0
    %v626 = vadd.f32 0.0, %v625
    %v627 = vpop.f32.mrb[0].mxu0
    %v628 = vadd.f32 0.0, %v627
    %629 = vdwg.mxu0
    %630 = vset.pattern.permute.xlu0 1
    %631 = vperm.xlu0 %630, %v87
    %v632 = vpop.permute.xlu0 %631
    %634 = vset.pattern.permute.xlu0 1
    %635 = vperm.xlu0 %634, %v88
    %v636 = vpop.permute.xlu0 %635
    %638 = vset.pattern.permute.xlu0 1
    %639 = vperm.xlu0 %638, %v89
    %v640 = vpop.permute.xlu0 %639
    %642 = vset.pattern.permute.xlu0 1
    %643 = vperm.xlu0 %642, %v90
    %v644 = vpop.permute.xlu0 %643
    %647 = vset.pattern.permute.xlu0 1
    %648 = vperm.xlu0 %647, %v91
    %v649 = vpop.permute.xlu0 %648
    %652 = vset.pattern.permute.xlu0 1
    %653 = vperm.xlu0 %652, %v92
    %v654 = vpop.permute.xlu0 %653
    %657 = vset.pattern.permute.xlu0 1
    %658 = vperm.xlu0 %657, %v93
    %v659 = vpop.permute.xlu0 %658
    %662 = vset.pattern.permute.xlu0 1
    %663 = vperm.xlu0 %662, %v94
    %v664 = vpop.permute.xlu0 %663
    %v666 = vmul.f32 %v471, %v632
    %v667 = vmul.f32 %v473, %v632
    %v668 = vmul.f32 %v584, %v632
    %v669 = vmul.f32 %v586, %v632
    %v670 = vmul.f32 %v477, %v636
    %v671 = vmul.f32 %v479, %v636
    %v672 = vmul.f32 %v590, %v636
    %v673 = vmul.f32 %v592, %v636
    %v674 = vmul.f32 %v483, %v640
    %v675 = vmul.f32 %v485, %v640
    %v676 = vmul.f32 %v596, %v640
    %v677 = vmul.f32 %v598, %v640
    %v678 = vmul.f32 %v489, %v644
    %v679 = vmul.f32 %v491, %v644
    %v680 = vmul.f32 %v602, %v644
    %v681 = vmul.f32 %v604, %v644
    %v682 = vmul.f32 %v495, %v649
    %v683 = vmul.f32 %v497, %v649
    %v684 = vmul.f32 %v608, %v649
    %v685 = vmul.f32 %v610, %v649
    %v686 = vmul.f32 %v501, %v654
    %v687 = vmul.f32 %v503, %v654
    %v688 = vmul.f32 %v614, %v654
    %v689 = vmul.f32 %v616, %v654
    %v690 = vmul.f32 %v507, %v659
    %v691 = vmul.f32 %v509, %v659
    %v692 = vmul.f32 %v620, %v659
    %v693 = vmul.f32 %v622, %v659
    %v694 = vmul.f32 %v513, %v664
    %v695 = vmul.f32 %v515, %v664
    %v696 = vmul.f32 %v626, %v664
    %v697 = vmul.f32 %v628, %v664
    %698 = vset.pattern.permute.xlu0 2
    %699 = vperm.xlu0 %698, %v87
    %v700 = vpop.permute.xlu0 %699
    %702 = vset.pattern.permute.xlu0 2
    %703 = vperm.xlu0 %702, %v88
    %v704 = vpop.permute.xlu0 %703
    %706 = vset.pattern.permute.xlu0 2
    %707 = vperm.xlu0 %706, %v89
    %v708 = vpop.permute.xlu0 %707
    %710 = vset.pattern.permute.xlu0 2
    %711 = vperm.xlu0 %710, %v90
    %v712 = vpop.permute.xlu0 %711
    %714 = vset.pattern.permute.xlu0 2
    %715 = vperm.xlu0 %714, %v91
    %v716 = vpop.permute.xlu0 %715
    %718 = vset.pattern.permute.xlu0 2
    %719 = vperm.xlu0 %718, %v92
    %v720 = vpop.permute.xlu0 %719
    %722 = vset.pattern.permute.xlu0 2
    %723 = vperm.xlu0 %722, %v93
    %v724 = vpop.permute.xlu0 %723
    %726 = vset.pattern.permute.xlu0 2
    %727 = vperm.xlu0 %726, %v94
    %v728 = vpop.permute.xlu0 %727
    %v730 = vadd.f32 %v666, %v700
    %v731 = vadd.f32 %v667, %v700
    %v732 = vadd.f32 %v668, %v700
    %v733 = vadd.f32 %v669, %v700
    %v734 = vadd.f32 %v670, %v704
    %v735 = vadd.f32 %v671, %v704
    %v736 = vadd.f32 %v672, %v704
    %v737 = vadd.f32 %v673, %v704
    %v738 = vadd.f32 %v674, %v708
    %v739 = vadd.f32 %v675, %v708
    %v740 = vadd.f32 %v676, %v708
    %v741 = vadd.f32 %v677, %v708
    %v742 = vadd.f32 %v678, %v712
    %v743 = vadd.f32 %v679, %v712
    %v744 = vadd.f32 %v680, %v712
    %v745 = vadd.f32 %v681, %v712
    %v746 = vadd.f32 %v682, %v716
    %v747 = vadd.f32 %v683, %v716
    %v748 = vadd.f32 %v684, %v716
    %v749 = vadd.f32 %v685, %v716
    %v750 = vadd.f32 %v686, %v720
    %v751 = vadd.f32 %v687, %v720
    %v752 = vadd.f32 %v688, %v720
    %v753 = vadd.f32 %v689, %v720
    %v754 = vadd.f32 %v690, %v724
    %v755 = vadd.f32 %v691, %v724
    %v756 = vadd.f32 %v692, %v724
    %v757 = vadd.f32 %v693, %v724
    %v758 = vadd.f32 %v694, %v728
    %v759 = vadd.f32 %v695, %v728
    %v760 = vadd.f32 %v696, %v728
    %v761 = vadd.f32 %v697, %v728
    %vm762 = vcmp.ge.f32.partialorder %v730, 0.0
    %vm763 = vcmp.ge.f32.partialorder %v731, 0.0
    %vm764 = vcmp.ge.f32.partialorder %v732, 0.0
    %vm765 = vcmp.ge.f32.partialorder %v733, 0.0
    %vm766 = vcmp.ge.f32.partialorder %v734, 0.0
    %vm767 = vcmp.ge.f32.partialorder %v735, 0.0
    %vm768 = vcmp.ge.f32.partialorder %v736, 0.0
    %vm769 = vcmp.ge.f32.partialorder %v737, 0.0
    %vm770 = vcmp.ge.f32.partialorder %v738, 0.0
    %vm771 = vcmp.ge.f32.partialorder %v739, 0.0
    %vm772 = vcmp.ge.f32.partialorder %v740, 0.0
    %vm773 = vcmp.ge.f32.partialorder %v741, 0.0
    %vm774 = vcmp.ge.f32.partialorder %v742, 0.0
    %vm775 = vcmp.ge.f32.partialorder %v743, 0.0
    %vm776 = vcmp.ge.f32.partialorder %v744, 0.0
    %vm777 = vcmp.ge.f32.partialorder %v745, 0.0
    %vm778 = vcmp.ge.f32.partialorder %v746, 0.0
    %vm779 = vcmp.ge.f32.partialorder %v747, 0.0
    %vm780 = vcmp.ge.f32.partialorder %v748, 0.0
    %vm781 = vcmp.ge.f32.partialorder %v749, 0.0
    %vm782 = vcmp.ge.f32.partialorder %v750, 0.0
    %vm783 = vcmp.ge.f32.partialorder %v751, 0.0
    %vm784 = vcmp.ge.f32.partialorder %v752, 0.0
    %vm785 = vcmp.ge.f32.partialorder %v753, 0.0
    %vm786 = vcmp.ge.f32.partialorder %v754, 0.0
    %vm787 = vcmp.ge.f32.partialorder %v755, 0.0
    %vm788 = vcmp.ge.f32.partialorder %v756, 0.0
    %vm789 = vcmp.ge.f32.partialorder %v757, 0.0
    %vm790 = vcmp.ge.f32.partialorder %v758, 0.0
    %vm791 = vcmp.ge.f32.partialorder %v759, 0.0
    %vm792 = vcmp.ge.f32.partialorder %v760, 0.0
    %vm793 = vcmp.ge.f32.partialorder %v761, 0.0
    %v794 = vmul.f32 %v730, 0.2
    %v795 = vmul.f32 %v731, 0.2
    %v796 = vmul.f32 %v732, 0.2
    %v797 = vmul.f32 %v733, 0.2
    %v798 = vmul.f32 %v734, 0.2
    %v799 = vmul.f32 %v735, 0.2
    %v800 = vmul.f32 %v736, 0.2
    %v801 = vmul.f32 %v737, 0.2
    %v802 = vmul.f32 %v738, 0.2
    %v803 = vmul.f32 %v739, 0.2
    %v804 = vmul.f32 %v740, 0.2
    %v805 = vmul.f32 %v741, 0.2
    %v806 = vmul.f32 %v742, 0.2
    %v807 = vmul.f32 %v743, 0.2
    %v808 = vmul.f32 %v744, 0.2
    %v809 = vmul.f32 %v745, 0.2
    %v810 = vmul.f32 %v746, 0.2
    %v811 = vmul.f32 %v747, 0.2
    %v812 = vmul.f32 %v748, 0.2
    %v813 = vmul.f32 %v749, 0.2
    %v814 = vmul.f32 %v750, 0.2
    %v815 = vmul.f32 %v751, 0.2
    %v816 = vmul.f32 %v752, 0.2
    %v817 = vmul.f32 %v753, 0.2
    %v818 = vmul.f32 %v754, 0.2
    %v819 = vmul.f32 %v755, 0.2
    %v820 = vmul.f32 %v756, 0.2
    %v821 = vmul.f32 %v757, 0.2
    %v822 = vmul.f32 %v758, 0.2
    %v823 = vmul.f32 %v759, 0.2
    %v824 = vmul.f32 %v760, 0.2
    %v825 = vmul.f32 %v761, 0.2
    %v826 = vsel %vm762, %v730, %v794
    %v827 = vsel %vm763, %v731, %v795
    %v828 = vsel %vm764, %v732, %v796
    %v829 = vsel %vm765, %v733, %v797
    %v830 = vsel %vm766, %v734, %v798
    %v831 = vsel %vm767, %v735, %v799
    %v832 = vsel %vm768, %v736, %v800
    %v833 = vsel %vm769, %v737, %v801
    %v834 = vsel %vm770, %v738, %v802
    %v835 = vsel %vm771, %v739, %v803
    %v836 = vsel %vm772, %v740, %v804
    %v837 = vsel %vm773, %v741, %v805
    %v838 = vsel %vm774, %v742, %v806
    %v839 = vsel %vm775, %v743, %v807
    %v840 = vsel %vm776, %v744, %v808
    %v841 = vsel %vm777, %v745, %v809
    %v842 = vsel %vm778, %v746, %v810
    %v843 = vsel %vm779, %v747, %v811
    %v844 = vsel %vm780, %v748, %v812
    %v845 = vsel %vm781, %v749, %v813
    %v846 = vsel %vm782, %v750, %v814
    %v847 = vsel %vm783, %v751, %v815
    %v848 = vsel %vm784, %v752, %v816
    %v849 = vsel %vm785, %v753, %v817
    %v850 = vsel %vm786, %v754, %v818
    %v851 = vsel %vm787, %v755, %v819
    %v852 = vsel %vm788, %v756, %v820
    %v853 = vsel %vm789, %v757, %v821
    %v854 = vsel %vm790, %v758, %v822
    %v855 = vsel %vm791, %v759, %v823
    %v856 = vsel %vm792, %v760, %v824
    %v857 = vsel %vm793, %v761, %v825
    %v858 = vld [vmem:[#allocation10] sm:$0x1]
    %vm859 = vcmask 523264
    %v861 = vsel %vm859, %v858, 0
    %863 = vmatprep.subr.mxu0 %v827
    %864 = vmatpush1.msra.mxu0 %v826
    %865 = vmatprep.subr.mxu0 %v831
    %866 = vmatpush1.msra.mxu0 %v830
    %867 = vmatprep.subr.mxu0 %v835
    %868 = vmatpush1.msra.mxu0 %v834
    %869 = vmatprep.subr.mxu0 %v839
    %870 = vmatpush1.msra.mxu0 %v838
    %871 = vmatprep.subr.mxu0 %v843
    %872 = vmatpush1.msra.mxu0 %v842
    %873 = vmatprep.subr.mxu0 %v847
    %874 = vmatpush1.msra.mxu0 %v846
    %875 = vmatprep.subr.mxu0 %v851
    %876 = vmatpush1.msra.mxu0 %v850
    %877 = vmatprep.subr.mxu0 %v855
    %878 = vmatpush1.msra.mxu0 %v854
    %879 = vmatprep.subr.mxu0 0.0
    %880 = vmatpush1.msra.mxu0 0.0
    %881 = vmatprep.subr.mxu0 0.0
    %882 = vmatpush1.msra.mxu0 0.0
    %883 = vmatprep.subr.mxu0 0.0
    %884 = vmatpush1.msra.mxu0 0.0
    %885 = vmatprep.subr.mxu0 0.0
    %886 = vmatpush1.msra.mxu0 0.0
    %887 = vmatprep.subr.mxu0 0.0
    %888 = vmatpush1.msra.mxu0 0.0
    %889 = vmatprep.subr.mxu0 0.0
    %890 = vmatpush1.msra.mxu0 0.0
    %891 = vmatprep.subr.mxu0 0.0
    %892 = vmatpush1.msra.mxu0 0.0
    %893 = vmatprep.subr.mxu0 0.0
    %894 = vmatpush1.msra.mxu0 0.0
    %895 = vmatprep.subr.mxu0 0.0
    %896 = vmatpush1.msra.mxu0 0.0
    %897 = vmatprep.subr.mxu0 0.0
    %898 = vmatpush1.msra.mxu0 0.0
    %899 = vmatprep.subr.mxu0 0.0
    %900 = vmatpush1.msra.mxu0 0.0
    %901 = vmatprep.subr.mxu0 0.0
    %902 = vmatpush1.msra.mxu0 0.0
    %903 = vmatprep.subr.mxu0 0.0
    %904 = vmatpush1.msra.mxu0 0.0
    %905 = vmatprep.subr.mxu0 0.0
    %906 = vmatpush1.msra.mxu0 0.0
    %907 = vmatprep.subr.mxu0 0.0
    %908 = vmatpush1.msra.mxu0 0.0
    %909 = vmatprep.subr.mxu0 0.0
    %910 = vmatpush1.msra.mxu0 0.0
    %911 = vmatprep.subr.mxu0 0.0
    %912 = vmatpush1.msra.mxu0 0.0
    %913 = vmatprep.subr.mxu0 0.0
    %914 = vmatpush1.msra.mxu0 0.0
    %915 = vmatprep.subr.mxu0 0.0
    %916 = vmatpush1.msra.mxu0 0.0
    %917 = vmatprep.subr.mxu0 0.0
    %918 = vmatpush1.msra.mxu0 0.0
    %919 = vmatprep.subr.mxu0 0.0
    %920 = vmatpush1.msra.mxu0 0.0
    %921 = vmatprep.subr.mxu0 0.0
    %922 = vmatpush1.msra.mxu0 0.0
    %923 = vmatprep.subr.mxu0 0.0
    %924 = vmatpush1.msra.mxu0 0.0
    %925 = vmatprep.subr.mxu0 0.0
    %926 = vmatpush1.msra.mxu0 0.0
    %927 = vmatprep.mubr.f32.mxu0 0.0
    %928 = vmatmul.mubr.f32.gmra.mrb[0].mxu0 %v861
    %v929 = vpop.f32.mrb[0].mxu0
    %v930 = vadd.f32 0.0, %v929
    %v931 = vpop.f32.mrb[0].mxu0
    %v932 = vadd.f32 0.0, %v931
    %933 = vdwg.mxu0
    %934 = vmatprep.subr.mxu0 %v829
    %935 = vmatpush1.msra.mxu0 %v828
    %936 = vmatprep.subr.mxu0 %v833
    %937 = vmatpush1.msra.mxu0 %v832
    %938 = vmatprep.subr.mxu0 %v837
    %939 = vmatpush1.msra.mxu0 %v836
    %940 = vmatprep.subr.mxu0 %v841
    %941 = vmatpush1.msra.mxu0 %v840
    %942 = vmatprep.subr.mxu0 %v845
    %943 = vmatpush1.msra.mxu0 %v844
    %944 = vmatprep.subr.mxu0 %v849
    %945 = vmatpush1.msra.mxu0 %v848
    %946 = vmatprep.subr.mxu0 %v853
    %947 = vmatpush1.msra.mxu0 %v852
    %948 = vmatprep.subr.mxu0 %v857
    %949 = vmatpush1.msra.mxu0 %v856
    %950 = vmatprep.subr.mxu0 0.0
    %951 = vmatpush1.msra.mxu0 0.0
    %952 = vmatprep.subr.mxu0 0.0
    %953 = vmatpush1.msra.mxu0 0.0
    %954 = vmatprep.subr.mxu0 0.0
    %955 = vmatpush1.msra.mxu0 0.0
    %956 = vmatprep.subr.mxu0 0.0
    %957 = vmatpush1.msra.mxu0 0.0
    %958 = vmatprep.subr.mxu0 0.0
    %959 = vmatpush1.msra.mxu0 0.0
    %960 = vmatprep.subr.mxu0 0.0
    %961 = vmatpush1.msra.mxu0 0.0
    %962 = vmatprep.subr.mxu0 0.0
    %963 = vmatpush1.msra.mxu0 0.0
    %964 = vmatprep.subr.mxu0 0.0
    %965 = vmatpush1.msra.mxu0 0.0
    %966 = vmatprep.subr.mxu0 0.0
    %967 = vmatpush1.msra.mxu0 0.0
    %968 = vmatprep.subr.mxu0 0.0
    %969 = vmatpush1.msra.mxu0 0.0
    %970 = vmatprep.subr.mxu0 0.0
    %971 = vmatpush1.msra.mxu0 0.0
    %972 = vmatprep.subr.mxu0 0.0
    %973 = vmatpush1.msra.mxu0 0.0
    %974 = vmatprep.subr.mxu0 0.0
    %975 = vmatpush1.msra.mxu0 0.0
    %976 = vmatprep.subr.mxu0 0.0
    %977 = vmatpush1.msra.mxu0 0.0
    %978 = vmatprep.subr.mxu0 0.0
    %979 = vmatpush1.msra.mxu0 0.0
    %980 = vmatprep.subr.mxu0 0.0
    %981 = vmatpush1.msra.mxu0 0.0
    %982 = vmatprep.subr.mxu0 0.0
    %983 = vmatpush1.msra.mxu0 0.0
    %984 = vmatprep.subr.mxu0 0.0
    %985 = vmatpush1.msra.mxu0 0.0
    %986 = vmatprep.subr.mxu0 0.0
    %987 = vmatpush1.msra.mxu0 0.0
    %988 = vmatprep.subr.mxu0 0.0
    %989 = vmatpush1.msra.mxu0 0.0
    %990 = vmatprep.subr.mxu0 0.0
    %991 = vmatpush1.msra.mxu0 0.0
    %992 = vmatprep.subr.mxu0 0.0
    %993 = vmatpush1.msra.mxu0 0.0
    %994 = vmatprep.subr.mxu0 0.0
    %995 = vmatpush1.msra.mxu0 0.0
    %996 = vmatprep.subr.mxu0 0.0
    %997 = vmatpush1.msra.mxu0 0.0
    %998 = vmatprep.mubr.f32.mxu0 0.0
    %999 = vmatmul.mubr.f32.gmra.mrb[0].mxu0 %v861
    %v1000 = vpop.f32.mrb[0].mxu0
    %v1001 = vadd.f32 0.0, %v1000
    %v1002 = vpop.f32.mrb[0].mxu0
    %v1003 = vadd.f32 0.0, %v1002
    %1004 = vdwg.mxu0
    %v1009 = vcombine.low %v930, %v932
    %v1010 = vcombine.low %v1001, %v1003
    %v1012 = vunpack.c.l.s4 1966171168
    %v1013 = vunpack.c.0.s8 %v1012
    %v1014 = vlaneseq
    %v1015 = vshrl.u32 %v1014, 7
    %v1016 = vsub.s32 %v1013, %v1015
    %v1017 = vrot.slane %v1009, %v1016
    %v1019 = vunpack.c.l.s4 1966171168
    %v1020 = vunpack.c.0.s8 %v1019
    %v1021 = vlaneseq
    %v1022 = vshrl.u32 %v1021, 7
    %v1023 = vsub.s32 %v1020, %v1022
    %v1024 = vrot.slane %v1010, %v1023
    %v1025 = vcombine.low %v1017, %v1024
    %v1027 = vunpack.c.l.s4 1966171168
    %v1028 = vunpack.c.0.s8 %v1027
    %v1029 = vlaneseq
    %v1030 = vshrl.u32 %v1029, 7
    %v1031 = vsub.s32 %v1028, %v1030
    %v1032 = vrot.slane %v1025, %v1031
    %v1034 = vlaneseq
    %vm1035 = vcmp.ge.s32.totalorder %v1034, 0
    %vm1036 = vcmp.lt.s32.totalorder %v1034, 512
    %vm1037 = vmand %vm1035, %vm1036
    %1038 = vst.msk [vmem:[#allocation11] sm:$0xf] %vm1037, %v1032
    // Predicated region
    $region42: #{pixel_discriminator.3} parent=1 // pred_check
      _
    $region43: #{pixel_discriminator.3} parent=1 // pred_check_branch
      %1040 = sbr.rel (0) target = $region45
    $region44: #{pixel_discriminator.3} parent=1 // pred_region
      %s1042 = ssub.s32 64, 64
      %1043 = vsyncadd [#allocation4], %s1042
      %s1045 = sshll.u32 [#allocation11], 4
      %s1046 = int_to_ptr.vmem [resolvable:$true] %s1045
      %1048 = dma.vmem_to_hbm [thread:$0]  %s1046, 64, %s5, [#allocation4]
    $region45: #{pixel_discriminator.3} parent=1 // pred_fallthru
      _
    // Predicated region
    $region46: #{pixel_discriminator.3} parent=1 // pred_check
      _
    $region47: #{pixel_discriminator.3} parent=1 // pred_check_branch
      %1050 = sbr.rel (0) target = $region49
    $region48: #{pixel_discriminator.3} parent=1 // pred_region
      %1051 = dma.done [#allocation4], 64
    $region49: #{pixel_discriminator.3} parent=1 // pred_fallthru
      _
    %1052 = vsyncpa [#allocation3], 1
    %1053 = vsyncpa [#allocation6], 1
    %1054 = vsyncpa [#allocation9], 1
    %1055 = vsyncpa [#allocation4], 1

</llo_original>
